<compile_context>
chip_gen: v6e
topology: v6e:2x2x1
jax: 0.10.0
libtpu: 0.0.40
codegen_flags: <defaults>
</compile_context>

<pallas_src>
import functools

import jax
import jax.numpy as jnp
from jax import lax
from jax.experimental import pallas as pl
from jax.experimental.pallas import tpu as pltpu


def _pick_tile(n, max_tile):
    """Largest lane-friendly tile (<= max_tile) that evenly divides n."""
    if n <= max_tile:
        return n
    t = (max_tile // 128) * 128
    while t >= 128:
        if n % t == 0:
            return t
        t -= 128
    return n  # fall back to a single full-size block


def _sa_kernel(cq_pad, x_q_ref, x_kv_ref, wq_ref, bq_ref, wkv_ref, bkv_ref,
               gamma_ref, out_ref, q_scr, m_scr, l_scr, acc_scr):
    ki = pl.program_id(2)

    @pl.when(ki == 0)
    def _init():
        # Query projection for this q tile (1x1 conv == channel matmul).
        q_scr[...] = (jnp.dot(wq_ref[...], x_q_ref[...],
                              preferred_element_type=jnp.float32)
                      + bq_ref[...])
        m_scr[...] = jnp.full_like(m_scr, -jnp.inf)
        l_scr[...] = jnp.zeros_like(l_scr)
        acc_scr[...] = jnp.zeros_like(acc_scr)

    # Fused K/V projection for this kv tile: (cq_pad + C, TK).
    kv = (jnp.dot(wkv_ref[...], x_kv_ref[...],
                  preferred_element_type=jnp.float32) + bkv_ref[...])
    k = kv[:cq_pad, :]       # (cq_pad, TK) -- sublane-aligned slice
    v = kv[cq_pad:, :]       # (C, TK)      -- sublane-aligned slice

    # Transposed scores: sT[kk, qq] = sum_c k[c, kk] * q[c, qq]  -> (TK, TQ).
    # dot_general consumes the "transposed" operand directly (no XLU transpose,
    # no extra N x N buffer).  bf16 MXU inputs, f32 accumulation.
    sT = lax.dot_general(
        k.astype(jnp.bfloat16), q_scr[...].astype(jnp.bfloat16),
        dimension_numbers=(((0,), (0,)), ((), ())),
        preferred_element_type=jnp.float32)

    # Online (flash) softmax over the key axis (= sublane axis of sT), f32.
    m_prev = m_scr[...]
    m_new = jnp.maximum(m_prev, jnp.max(sT, axis=0, keepdims=True))   # (1, TQ)
    alpha = jnp.exp(m_prev - m_new)                                   # (1, TQ)
    p = jnp.exp(sT - m_new)                                           # (TK, TQ)
    l_scr[...] = alpha * l_scr[...] + jnp.sum(p, axis=0, keepdims=True)
    acc_scr[...] = alpha * acc_scr[...] + jnp.dot(
        v.astype(jnp.bfloat16), p.astype(jnp.bfloat16),
        preferred_element_type=jnp.float32)                           # (C, TQ)
    m_scr[...] = m_new

    @pl.when(ki == pl.num_programs(2) - 1)
    def _finalize():
        inv_l = pl.reciprocal(l_scr[...], approx=True)                # (1, TQ)
        gamma = gamma_ref[0, 0]
        out_ref[...] = (gamma * (acc_scr[...] * inv_l)
                        + x_q_ref[...]).astype(out_ref.dtype)


def self_attention_pallas(x_nchw, wq, bq, wk, bk, wv, bv, gamma,
                          *, tq_max=256, tk_max=512):
    """x_nchw: (B, C, W, H) float32. Returns (B, C, W, H) float32."""
    B, C, W, H = x_nchw.shape
    N = W * H
    Cq = wq.shape[0]
    cq_pad = max(8, ((Cq + 7) // 8) * 8)   # sublane-aligned q/k channel count
    f32 = jnp.float32

    x_flat = x_nchw.reshape(B, C, N).astype(f32)

    # Zero-pad Wq/Wk (and biases) to cq_pad rows: padded rows are exactly zero
    # in both q and k, so they contribute 0 to the q^T k contraction.
    wq_p = jnp.zeros((cq_pad, C), f32).at[:Cq, :].set(wq.astype(f32))
    bq_p = jnp.zeros((cq_pad, 1), f32).at[:Cq, 0].set(bq.astype(f32))
    wk_p = jnp.zeros((cq_pad, C), f32).at[:Cq, :].set(wk.astype(f32))
    bk_p = jnp.zeros((cq_pad, 1), f32).at[:Cq, 0].set(bk.astype(f32))

    # Fuse K and V projections into one matmul (loads x through the MXU once).
    wkv = jnp.concatenate([wk_p, wv.astype(f32)], axis=0)              # (cq_pad+C, C)
    bkv = jnp.concatenate([bk_p, bv.reshape(C, 1).astype(f32)], axis=0)
    gamma2 = jnp.asarray(gamma, f32).reshape(1, 1)

    TQ = _pick_tile(N, tq_max)
    TK = _pick_tile(N, tk_max)
    grid = (B, N // TQ, N // TK)

    kernel = functools.partial(_sa_kernel, cq_pad)

    out_flat = pl.pallas_call(
        kernel,
        out_shape=jax.ShapeDtypeStruct((B, C, N), f32),
        grid_spec=pltpu.PrefetchScalarGridSpec(
            num_scalar_prefetch=0,
            grid=grid,
            in_specs=[
                pl.BlockSpec((None, C, TQ), lambda b, qi, ki: (b, 0, qi)),  # x (q tile)
                pl.BlockSpec((None, C, TK), lambda b, qi, ki: (b, 0, ki)),  # x (kv tile)
                pl.BlockSpec((cq_pad, C), lambda b, qi, ki: (0, 0)),        # Wq (padded)
                pl.BlockSpec((cq_pad, 1), lambda b, qi, ki: (0, 0)),        # bq (padded)
                pl.BlockSpec((cq_pad + C, C), lambda b, qi, ki: (0, 0)),    # [Wk;Wv]
                pl.BlockSpec((cq_pad + C, 1), lambda b, qi, ki: (0, 0)),    # [bk;bv]
                pl.BlockSpec(memory_space=pltpu.SMEM),                      # gamma (1,1)
            ],
            out_specs=pl.BlockSpec((None, C, TQ), lambda b, qi, ki: (b, 0, qi)),
            scratch_shapes=[
                pltpu.VMEM((cq_pad, TQ), f32),   # q tile
                pltpu.VMEM((1, TQ), f32),        # running max
                pltpu.VMEM((1, TQ), f32),        # running sum
                pltpu.VMEM((C, TQ), f32),        # output accumulator
            ]),
        compiler_params=pltpu.CompilerParams(
            dimension_semantics=("parallel", "parallel", "arbitrary"),
            vmem_limit_bytes=48 * 1024 * 1024),
    )(x_flat, x_flat, wq_p, bq_p, wkv, bkv, gamma2)

    return out_flat.reshape(B, C, W, H)


def self_attention_ref(x_nchw, wq, bq, wk, bk, wv, bv, gamma):
    """Pure-JAX f32 reference mirroring the PyTorch forward."""
    B, C, W, H = x_nchw.shape
    N = W * H
    x = x_nchw.reshape(B, C, N)
    q = jnp.einsum('oc,bcn->bon', wq, x) + bq[None, :, None]   # (B, Cq, N)
    k = jnp.einsum('oc,bcn->bon', wk, x) + bk[None, :, None]   # (B, Cq, N)
    v = jnp.einsum('oc,bcn->bon', wv, x) + bv[None, :, None]   # (B, C, N)
    energy = jnp.einsum('bcn,bcm->bnm', q, k)                  # (B, N, N)
    attn = jax.nn.softmax(energy, axis=-1)
    out = jnp.einsum('bcn,bmn->bcm', v, attn)                  # (B, C, N)
    out = gamma * out + x
    return out.reshape(B, C, W, H)


if __name__ == "__main__":
    B, C, W, H = 2, 16, 16, 16           # in_dim=16 -> query/key channels = 2
    Cq = C // 8

    key = jax.random.PRNGKey(0)
    kx, k1, k2, k3, k4, k5, k6 = jax.random.split(key, 7)

    x = jax.random.normal(kx, (B, C, W, H), dtype=jnp.float32)

    # Deterministic parameter init (Conv2d 1x1 weights reshaped to (Cout, Cin)).
    wq = jax.random.normal(k1, (Cq, C), dtype=jnp.float32) * 0.2
    bq = jax.random.normal(k2, (Cq,), dtype=jnp.float32) * 0.05
    wk = jax.random.normal(k3, (Cq, C), dtype=jnp.float32) * 0.2
    bk = jax.random.normal(k4, (Cq,), dtype=jnp.float32) * 0.05
    wv = jax.random.normal(k5, (C, C), dtype=jnp.float32) * 0.2
    bv = jax.random.normal(k6, (C,), dtype=jnp.float32) * 0.05
    # PyTorch initializes gamma to 0 (output == x); use a nonzero deterministic
    # value so the attention path is actually exercised.
    gamma = jnp.float32(0.5)

    out = self_attention_pallas(x, wq, bq, wk, bk, wv, bv, gamma)
    out = jax.block_until_ready(out)

    ref = self_attention_ref(x, wq, bq, wk, bk, wv, bv, gamma)
    assert out.shape == (B, C, W, H)
    # bf16 MXU inputs (f32 accumulation) + approx reciprocal -> slightly looser
    # tolerance vs the pure-f32 reference.
    assert jnp.allclose(out, ref, atol=3e-2, rtol=3e-2), "mismatch vs reference"

    print("KERNEL_OK")
</pallas_src>

<mosaic_0001>
module attributes {stable_mosaic.version = 11 : i64} {
  func.func @_sa_kernel(%arg0: i32, %arg1: i32, %arg2: i32, %arg3: memref<1x16x256xf32, #tpu.memory_space<vmem>>, %arg4: memref<1x16x256xf32, #tpu.memory_space<vmem>>, %arg5: memref<8x16xf32, #tpu.memory_space<vmem>>, %arg6: memref<8x1xf32, #tpu.memory_space<vmem>>, %arg7: memref<24x16xf32, #tpu.memory_space<vmem>>, %arg8: memref<24x1xf32, #tpu.memory_space<vmem>>, %arg9: memref<1x1xf32, #tpu.memory_space<smem>>, %arg10: memref<1x16x256xf32, #tpu.memory_space<vmem>>, %arg11: memref<8x256xf32, #tpu.memory_space<vmem>>, %arg12: memref<1x256xf32, #tpu.memory_space<vmem>>, %arg13: memref<1x256xf32, #tpu.memory_space<vmem>>, %arg14: memref<16x256xf32, #tpu.memory_space<vmem>>) attributes {dimension_semantics = [#tpu.dimension_semantics<parallel>, #tpu.dimension_semantics<parallel>, #tpu.dimension_semantics<arbitrary>], iteration_bounds = array<i64: 2, 1, 1>, scalar_prefetch = 0 : i64, scratch_operands = 4 : i64, tpu.core_type = #tpu.core_type<tc>, window_params = [{transform_indices = @transform_0, window_bounds = array<i64: 1, 16, 256>}, {transform_indices = @transform_1, window_bounds = array<i64: 1, 16, 256>}, {pipeline_mode = #tpu.pipeline_mode<synchronous>, transform_indices = @transform_2, window_bounds = array<i64: 8, 16>}, {pipeline_mode = #tpu.pipeline_mode<synchronous>, transform_indices = @transform_3, window_bounds = array<i64: 8, 1>}, {pipeline_mode = #tpu.pipeline_mode<synchronous>, transform_indices = @transform_4, window_bounds = array<i64: 24, 16>}, {pipeline_mode = #tpu.pipeline_mode<synchronous>, transform_indices = @transform_5, window_bounds = array<i64: 24, 1>}, {transform_indices = @transform_6, window_bounds = array<i64: 1, 1>}, {transform_indices = @transform_7, window_bounds = array<i64: 1, 16, 256>}]} {
    %c0_i32 = arith.constant 0 : i32
    %0 = arith.cmpi eq, %arg2, %c0_i32 : i32
    %1 = arith.extui %0 : i1 to i32
    %c0_i32_0 = arith.constant 0 : i32
    %2 = arith.cmpi ne, %1, %c0_i32_0 : i32
    scf.if %2 {
      %c0_27 = arith.constant 0 : index
      %c0_28 = arith.constant 0 : index
      %43 = vector.load %arg5[%c0_27, %c0_28] : memref<8x16xf32, #tpu.memory_space<vmem>>, vector<8x16xf32>
      %c0_29 = arith.constant 0 : index
      %c0_30 = arith.constant 0 : index
      %c0_31 = arith.constant 0 : index
      %44 = vector.load %arg3[%c0_29, %c0_30, %c0_31] : memref<1x16x256xf32, #tpu.memory_space<vmem>>, vector<1x16x256xf32>
      %45 = vector.shape_cast %44 : vector<1x16x256xf32> to vector<16x256xf32>
      %cst_32 = arith.constant dense<0.000000e+00> : vector<8x256xf32>
      %46 = tpu.matmul %43, %45, %cst_32 {dimension_numbers = #tpu.dot_dimension_numbers<[1], [0], [0], [1], [0, 0, 1, 1], [], []>} : vector<8x16xf32>, vector<16x256xf32>, vector<8x256xf32> -> vector<8x256xf32>
      %c0_33 = arith.constant 0 : index
      %c0_34 = arith.constant 0 : index
      %47 = vector.load %arg6[%c0_33, %c0_34] : memref<8x1xf32, #tpu.memory_space<vmem>>, vector<8x1xf32>
      %48 = vector.broadcast %47 : vector<8x1xf32> to vector<8x256xf32>
      %49 = arith.addf %46, %48 : vector<8x256xf32>
      %c0_35 = arith.constant 0 : index
      %c0_36 = arith.constant 0 : index
      %50 = vector.load %arg11[%c0_35, %c0_36] : memref<8x256xf32, #tpu.memory_space<vmem>>, vector<8x256xf32>
      tpu.vector_store %arg11[%c0_35, %c0_36], %49 {strides = array<i32>} : memref<8x256xf32, #tpu.memory_space<vmem>>, vector<8x256xf32>,
      %cst_37 = arith.constant 0xFF800000 : f32
      %51 = vector.broadcast %cst_37 : f32 to vector<1x256xf32>
      %c0_38 = arith.constant 0 : index
      %c0_39 = arith.constant 0 : index
      %52 = vector.load %arg12[%c0_38, %c0_39] : memref<1x256xf32, #tpu.memory_space<vmem>>, vector<1x256xf32>
      tpu.vector_store %arg12[%c0_38, %c0_39], %51 {strides = array<i32>} : memref<1x256xf32, #tpu.memory_space<vmem>>, vector<1x256xf32>,
      %cst_40 = arith.constant 0.000000e+00 : f32
      %53 = vector.broadcast %cst_40 : f32 to vector<1x256xf32>
      %c0_41 = arith.constant 0 : index
      %c0_42 = arith.constant 0 : index
      %54 = vector.load %arg13[%c0_41, %c0_42] : memref<1x256xf32, #tpu.memory_space<vmem>>, vector<1x256xf32>
      tpu.vector_store %arg13[%c0_41, %c0_42], %53 {strides = array<i32>} : memref<1x256xf32, #tpu.memory_space<vmem>>, vector<1x256xf32>,
      %cst_43 = arith.constant 0.000000e+00 : f32
      %55 = vector.broadcast %cst_43 : f32 to vector<16x256xf32>
      %c0_44 = arith.constant 0 : index
      %c0_45 = arith.constant 0 : index
      %56 = vector.load %arg14[%c0_44, %c0_45] : memref<16x256xf32, #tpu.memory_space<vmem>>, vector<16x256xf32>
      tpu.vector_store %arg14[%c0_44, %c0_45], %55 {strides = array<i32>} : memref<16x256xf32, #tpu.memory_space<vmem>>, vector<16x256xf32>,
    } else {
    }
    %c0 = arith.constant 0 : index
    %c0_1 = arith.constant 0 : index
    %3 = vector.load %arg7[%c0, %c0_1] : memref<24x16xf32, #tpu.memory_space<vmem>>, vector<24x16xf32>
    %c0_2 = arith.constant 0 : index
    %c0_3 = arith.constant 0 : index
    %c0_4 = arith.constant 0 : index
    %4 = vector.load %arg4[%c0_2, %c0_3, %c0_4] : memref<1x16x256xf32, #tpu.memory_space<vmem>>, vector<1x16x256xf32>
    %5 = vector.shape_cast %4 : vector<1x16x256xf32> to vector<16x256xf32>
    %cst = arith.constant dense<0.000000e+00> : vector<24x256xf32>
    %6 = tpu.matmul %3, %5, %cst {dimension_numbers = #tpu.dot_dimension_numbers<[1], [0], [0], [1], [0, 0, 1, 1], [], []>} : vector<24x16xf32>, vector<16x256xf32>, vector<24x256xf32> -> vector<24x256xf32>
    %c0_5 = arith.constant 0 : index
    %c0_6 = arith.constant 0 : index
    %7 = vector.load %arg8[%c0_5, %c0_6] : memref<24x1xf32, #tpu.memory_space<vmem>>, vector<24x1xf32>
    %8 = vector.broadcast %7 : vector<24x1xf32> to vector<24x256xf32>
    %9 = arith.addf %6, %8 : vector<24x256xf32>
    %10 = vector.extract_strided_slice %9 {offsets = [0, 0], sizes = [8, 256], strides = [1, 1]} : vector<24x256xf32> to vector<8x256xf32>
    %11 = vector.extract_strided_slice %9 {offsets = [8, 0], sizes = [16, 256], strides = [1, 1]} : vector<24x256xf32> to vector<16x256xf32>
    %12 = arith.truncf %10 : vector<8x256xf32> to vector<8x256xbf16>
    %c0_7 = arith.constant 0 : index
    %c0_8 = arith.constant 0 : index
    %13 = vector.load %arg11[%c0_7, %c0_8] : memref<8x256xf32, #tpu.memory_space<vmem>>, vector<8x256xf32>
    %14 = arith.truncf %13 : vector<8x256xf32> to vector<8x256xbf16>
    %cst_9 = arith.constant dense<0.000000e+00> : vector<256x256xf32>
    %15 = tpu.matmul %12, %14, %cst_9 {dimension_numbers = #tpu.dot_dimension_numbers<[0], [0], [1], [1], [0, 1, 1, 1], [], []>} : vector<8x256xbf16>, vector<8x256xbf16>, vector<256x256xf32> -> vector<256x256xf32>
    %c0_10 = arith.constant 0 : index
    %c0_11 = arith.constant 0 : index
    %16 = vector.load %arg12[%c0_10, %c0_11] : memref<1x256xf32, #tpu.memory_space<vmem>>, vector<1x256xf32>
    %cst_12 = arith.constant dense<0xFF800000> : vector<256xf32>
    %17 = vector.multi_reduction <maximumf>, %15, %cst_12 [0] : vector<256x256xf32> to vector<256xf32>
    %18 = vector.shape_cast %17 : vector<256xf32> to vector<1x256xf32>
    %19 = arith.maximumf %16, %18 : vector<1x256xf32>
    %20 = arith.subf %16, %19 : vector<1x256xf32>
    %21 = math.exp %20 : vector<1x256xf32>
    %22 = vector.broadcast %19 : vector<1x256xf32> to vector<256x256xf32>
    %23 = arith.subf %15, %22 : vector<256x256xf32>
    %24 = math.exp %23 : vector<256x256xf32>
    %c0_13 = arith.constant 0 : index
    %c0_14 = arith.constant 0 : index
    %25 = vector.load %arg13[%c0_13, %c0_14] : memref<1x256xf32, #tpu.memory_space<vmem>>, vector<1x256xf32>
    %26 = arith.mulf %21, %25 : vector<1x256xf32>
    %cst_15 = arith.constant dense<0.000000e+00> : vector<256xf32>
    %27 = vector.multi_reduction <add>, %24, %cst_15 [0] : vector<256x256xf32> to vector<256xf32>
    %28 = vector.shape_cast %27 : vector<256xf32> to vector<1x256xf32>
    %29 = arith.addf %26, %28 : vector<1x256xf32>
    %c0_16 = arith.constant 0 : index
    %c0_17 = arith.constant 0 : index
    %30 = vector.load %arg13[%c0_16, %c0_17] : memref<1x256xf32, #tpu.memory_space<vmem>>, vector<1x256xf32>
    tpu.vector_store %arg13[%c0_16, %c0_17], %29 {strides = array<i32>} : memref<1x256xf32, #tpu.memory_space<vmem>>, vector<1x256xf32>,
    %c0_18 = arith.constant 0 : index
    %c0_19 = arith.constant 0 : index
    %31 = vector.load %arg14[%c0_18, %c0_19] : memref<16x256xf32, #tpu.memory_space<vmem>>, vector<16x256xf32>
    %32 = vector.broadcast %21 : vector<1x256xf32> to vector<16x256xf32>
    %33 = arith.mulf %32, %31 : vector<16x256xf32>
    %34 = arith.truncf %11 : vector<16x256xf32> to vector<16x256xbf16>
    %35 = arith.truncf %24 : vector<256x256xf32> to vector<256x256xbf16>
    %cst_20 = arith.constant dense<0.000000e+00> : vector<16x256xf32>
    %36 = tpu.matmul %34, %35, %cst_20 {dimension_numbers = #tpu.dot_dimension_numbers<[1], [0], [0], [1], [0, 0, 1, 1], [], []>} : vector<16x256xbf16>, vector<256x256xbf16>, vector<16x256xf32> -> vector<16x256xf32>
    %37 = arith.addf %33, %36 : vector<16x256xf32>
    %c0_21 = arith.constant 0 : index
    %c0_22 = arith.constant 0 : index
    %38 = vector.load %arg14[%c0_21, %c0_22] : memref<16x256xf32, #tpu.memory_space<vmem>>, vector<16x256xf32>
    tpu.vector_store %arg14[%c0_21, %c0_22], %37 {strides = array<i32>} : memref<16x256xf32, #tpu.memory_space<vmem>>, vector<16x256xf32>,
    %c0_23 = arith.constant 0 : index
    %c0_24 = arith.constant 0 : index
    %39 = vector.load %arg12[%c0_23, %c0_24] : memref<1x256xf32, #tpu.memory_space<vmem>>, vector<1x256xf32>
    tpu.vector_store %arg12[%c0_23, %c0_24], %19 {strides = array<i32>} : memref<1x256xf32, #tpu.memory_space<vmem>>, vector<1x256xf32>,
    %c0_i32_25 = arith.constant 0 : i32
    %40 = arith.cmpi eq, %arg2, %c0_i32_25 : i32
    %41 = arith.extui %40 : i1 to i32
    %c0_i32_26 = arith.constant 0 : i32
    %42 = arith.cmpi ne, %41, %c0_i32_26 : i32
    scf.if %42 {
      %c0_27 = arith.constant 0 : index
      %c0_28 = arith.constant 0 : index
      %43 = vector.load %arg13[%c0_27, %c0_28] : memref<1x256xf32, #tpu.memory_space<vmem>>, vector<1x256xf32>
      %44 = tpu.reciprocal %43 {approx = true} : vector<1x256xf32> -> vector<1x256xf32>
      %c0_29 = arith.constant 0 : index
      %c0_30 = arith.constant 0 : index
      %45 = memref.load %arg9[%c0_29, %c0_30] : memref<1x1xf32, #tpu.memory_space<smem>>
      %c0_31 = arith.constant 0 : index
      %c0_32 = arith.constant 0 : index
      %46 = vector.load %arg14[%c0_31, %c0_32] : memref<16x256xf32, #tpu.memory_space<vmem>>, vector<16x256xf32>
      %47 = vector.broadcast %44 : vector<1x256xf32> to vector<16x256xf32>
      %48 = arith.mulf %46, %47 : vector<16x256xf32>
      %49 = vector.broadcast %45 : f32 to vector<16x256xf32>
      %50 = arith.mulf %49, %48 : vector<16x256xf32>
      %c0_33 = arith.constant 0 : index
      %c0_34 = arith.constant 0 : index
      %c0_35 = arith.constant 0 : index
      %51 = vector.load %arg3[%c0_33, %c0_34, %c0_35] : memref<1x16x256xf32, #tpu.memory_space<vmem>>, vector<1x16x256xf32>
      %52 = vector.shape_cast %51 : vector<1x16x256xf32> to vector<16x256xf32>
      %53 = arith.addf %50, %52 : vector<16x256xf32>
      %c0_36 = arith.constant 0 : index
      %c0_37 = arith.constant 0 : index
      %c0_38 = arith.constant 0 : index
      %54 = vector.load %arg10[%c0_36, %c0_37, %c0_38] : memref<1x16x256xf32, #tpu.memory_space<vmem>>, vector<1x16x256xf32>
      %55 = vector.shape_cast %54 : vector<1x16x256xf32> to vector<16x256xf32>
      %56 = vector.shape_cast %53 : vector<16x256xf32> to vector<1x16x256xf32>
      tpu.vector_store %arg10[%c0_36, %c0_37, %c0_38], %56 {strides = array<i32>} : memref<1x16x256xf32, #tpu.memory_space<vmem>>, vector<1x16x256xf32>,
    } else {
    }
    return
  }
  func.func @transform_0(%arg0: i32, %arg1: i32, %arg2: i32) -> (i32, i32, i32) {
    %c0_i32 = arith.constant 0 : i32
    %c0_i32_0 = arith.constant 0 : i32
    return %arg0, %c0_i32, %arg1 : i32, i32, i32
  }
  func.func @transform_1(%arg0: i32, %arg1: i32, %arg2: i32) -> (i32, i32, i32) {
    %c0_i32 = arith.constant 0 : i32
    %c0_i32_0 = arith.constant 0 : i32
    return %arg0, %c0_i32, %arg2 : i32, i32, i32
  }
  func.func @transform_2(%arg0: i32, %arg1: i32, %arg2: i32) -> (i32, i32) {
    %c0_i32 = arith.constant 0 : i32
    %c0_i32_0 = arith.constant 0 : i32
    %c0_i32_1 = arith.constant 0 : i32
    return %c0_i32, %c0_i32_0 : i32, i32
  }
  func.func @transform_3(%arg0: i32, %arg1: i32, %arg2: i32) -> (i32, i32) {
    %c0_i32 = arith.constant 0 : i32
    %c0_i32_0 = arith.constant 0 : i32
    %c0_i32_1 = arith.constant 0 : i32
    return %c0_i32, %c0_i32_0 : i32, i32
  }
  func.func @transform_4(%arg0: i32, %arg1: i32, %arg2: i32) -> (i32, i32) {
    %c0_i32 = arith.constant 0 : i32
    %c0_i32_0 = arith.constant 0 : i32
    %c0_i32_1 = arith.constant 0 : i32
    return %c0_i32, %c0_i32_0 : i32, i32
  }
  func.func @transform_5(%arg0: i32, %arg1: i32, %arg2: i32) -> (i32, i32) {
    %c0_i32 = arith.constant 0 : i32
    %c0_i32_0 = arith.constant 0 : i32
    %c0_i32_1 = arith.constant 0 : i32
    return %c0_i32, %c0_i32_0 : i32, i32
  }
  func.func @transform_6(%arg0: i32, %arg1: i32, %arg2: i32) -> (i32, i32) {
    %c0_i32 = arith.constant 0 : i32
    %c0_i32_0 = arith.constant 0 : i32
    %c0_i32_1 = arith.constant 0 : i32
    return %c0_i32, %c0_i32_0 : i32, i32
  }
  func.func @transform_7(%arg0: i32, %arg1: i32, %arg2: i32) -> (i32, i32, i32) {
    %c0_i32 = arith.constant 0 : i32
    %c0_i32_0 = arith.constant 0 : i32
    return %arg0, %c0_i32, %arg1 : i32, i32, i32
  }
}

</mosaic_0001>

<llo_original>
// kernel: tpu_custom_call.1
$region0: #{tpu_custom_call.1}
  #allocation0 [shape = 'u32[]', space=smem, size = 0x4, offset = 0x4, fixed_abs, tag = 'smem constant byte address 0x4 - core index']
  #allocation1 [shape = 'u32[144,128]{1,0:T(1,128)}', space=vmem, size = 0x12000, scoped, tag = 'internal scratch']
  #allocation2 [shape = 'f32[8,256]{1,0:T(8,128)}', space=vmem, size = 0x2000, scoped, tag = 'scratch operand']
  #allocation3 [shape = 'f32[1,256]{1,0:T(1,128)}', space=vmem, size = 0x400, scoped, tag = 'scratch operand']
  #allocation4 [shape = 'f32[1,256]{1,0:T(1,128)}', space=vmem, size = 0x400, scoped, tag = 'scratch operand']
  #allocation5 [shape = 'f32[16,256]{1,0:T(8,128)}', space=vmem, size = 0x4000, scoped, tag = 'scratch operand']
  #allocation6 [shape = 'f32[1,1]{1,0:T(1,128)S(6)}', space=smem, size = 0x200, scoped, tag = 'scoped memory for tpu_custom_call.1']
  %s0 = inlined_call_operand.vmem [shape: f32[2,16,256], index: 0, kind: input, shape index: {}]
  %s1 = inlined_call_operand.hbm [shape: f32[2,16,256], index: 1, kind: input, shape index: {}]
  %s2 = inlined_call_operand.hbm [shape: f32[8,16], index: 2, kind: input, shape index: {}]
  %s3 = inlined_call_operand.vmem [shape: f32[8,1], index: 3, kind: input, shape index: {}]
  %s4 = inlined_call_operand.vmem [shape: f32[24,16], index: 4, kind: input, shape index: {}]
  %s5 = inlined_call_operand.vmem [shape: f32[24,1], index: 5, kind: input, shape index: {}]
  %s6 = inlined_call_operand.<no memory space> [shape: f32[1,1], index: 6, kind: input, shape index: {}]
  %s7 = inlined_call_operand.hbm [shape: f32[2,16,256], index: 7, kind: output, shape index: {}]
  %s8 = sld [smem:[#allocation0]]
  $region77: #{tpu_custom_call.1} parent=0
    _
  %s10 = ssub.s32 1, %s8
  %s11 = scalar_select 0, %s10, %s8
  %12 = sst [smem:[#allocation6]] %s6
  $region1: #{tpu_custom_call.1} parent=0
    #allocation7 [shape = 'u8[32768]{0}', space=vmem, size = 0x8000, scoped, tag = 'input window, operand 1']
    #allocation8 [shape = 's32[2]{0}', space=sflag, size = 0x8, scoped, tag = 'scoped memory for tpu_custom_call.1']
    #allocation9 [shape = 's32[2]{0}', space=sflag, size = 0x8, scoped, tag = 'scoped memory for tpu_custom_call.1']
    #allocation10 [shape = 'u8[4096]{0}', space=vmem, size = 0x1000, scoped, tag = 'input window, operand 2, single buffered']
    #allocation11 [shape = 's32[1]{0}', space=sflag, size = 0x4, scoped, tag = 'scoped memory for tpu_custom_call.1']
    #allocation12 [shape = 'u8[32768]{0}', space=vmem, size = 0x8000, scoped, tag = 'output window, operand 0']
    %13 = vsyncpa [#allocation8], 0
    %s14 = scalar_lea.sflag [#allocation8], 1
    %15 = vsyncpa %s14, 0
    %16 = vsyncpa [#allocation11], 0
    %17 = vsyncpa [#allocation9], 0
    %s18 = scalar_lea.sflag [#allocation9], 1
    %19 = vsyncpa %s18, 0
    loop: start=0, step=1, limit=4
    $region2: #{tpu_custom_call.1} parent=1 // loop_pre_header
      _
    $region3: #{tpu_custom_call.1} parent=1 // loop_header
      %s21 = sphi 0, %s25
      %p22 = scmp.ge.s32.totalorder %s21, 4
      %s28 = sphi 0, %s47
      %s29 = sphi 0, %s43
      %s30 = sphi 0, %s39
      %s31 = sphi 0, %s28
      %s32 = sphi 0, %s29
      %s33 = sphi 0, %s30
      %s34 = sphi 0, %s31
      %s35 = sphi 0, %s32
      %s36 = sphi 0, %s33
      %s52 = sphi 0, %s54
      %s55 = sphi 0, %s52
      %s56 = sphi 0, %s55
      %s72 = sphi 0, %s56
      %s80 = sphi 0, %s82
      %s83 = sphi 0, %s80
      %s84 = sphi 0, %s83
      %s100 = sphi 0, %s84
      %s104 = sphi 0, %s104
      %s106 = sphi 0, %s104
      %s107 = sphi 0, %s106
      %s121 = sphi 0, %s107
      %s125 = sphi 0, %s125
      %s127 = sphi 0, %s125
      %s128 = sphi 0, %s127
      %s142 = sphi 0, %s128
      %s146 = sphi 0, %s146
      %s148 = sphi 0, %s146
      %s149 = sphi 0, %s148
      %s163 = sphi 0, %s149
      %s167 = sphi 0, %s167
      %s169 = sphi 0, %s167
      %s170 = sphi 0, %s169
      %s184 = sphi 0, %s170
      %s188 = sphi 0, %s188
      %s190 = sphi 0, %s188
      %s191 = sphi 0, %s190
      %s205 = sphi 0, %s191
      %s213 = sphi 0, %s215
      %s216 = sphi 0, %s213
      %s217 = sphi 0, %s216
      %s233 = sphi 0, %s217
    $region4: #{tpu_custom_call.1} parent=1 // loop_header_branch
      %24 = sbr.rel (%p22) target = $region8
    $region5: #{tpu_custom_call.1} parent=1 // loop_body
      %s26 = ssub.s32 %s21, 1
      %s27 = ssub.s32 %s21, 2
      %s37 = sadd.s32 1, %s30
      %p38 = scmp.ge.s32.totalorder %s37, 1
      %s39 = scalar_select %p38, 0, %s37
      %s40 = sadd.s32 1, %s29
      %s41 = scalar_select %p38, %s40, %s29
      %p42 = scmp.ge.s32.totalorder %s41, 1
      %s43 = scalar_select %p42, 0, %s41
      %s44 = sadd.s32 1, %s28
      %s45 = scalar_select %p42, %s44, %s28
      %p46 = scmp.ge.s32.totalorder %s45, 2
      %s47 = scalar_select %p46, 0, %s45
      %s48 = ssub.s32 %s28, %s47
      %s49 = ssub.s32 %s29, %s43
      %s50 = sor.u32 %s48, %s49
      %p51 = scmp.eq.s32.totalorder %s50, 0
      %s53 = sadd.s32 %s52, 1
      %s54 = scalar_select %p51, %s52, %s53
      %p57 = pneg %p51
      %p58 = scmp.eq.s32.totalorder %s21, 1
      %p59 = por %p57, %p58
      %p60 = scmp.ne.s32.totalorder %s52, %s55
      %p61 = scmp.eq.s32.totalorder %s21, 0
      %p62 = por %p60, %p61
      %p63 = scmp.ne.s32.totalorder %s52, %s55
      %p64 = scmp.eq.s32.totalorder %s26, 1
      %p65 = por %p63, %p64
      %p66 = scmp.ne.s32.totalorder %s55, %s56
      %p67 = scmp.eq.s32.totalorder %s26, 0
      %p68 = por %p66, %p67
      %p69 = scmp.ne.s32.totalorder %s55, %s56
      %p70 = scmp.eq.s32.totalorder %s27, 1
      %p71 = por %p69, %p70
      %p73 = scmp.ne.s32.totalorder %s56, %s72
      %p74 = scmp.eq.s32.totalorder %s27, 0
      %p75 = por %p73, %p74
      %s76 = ssub.s32 %s28, %s47
      %s77 = ssub.s32 %s30, %s39
      %s78 = sor.u32 %s76, %s77
      %p79 = scmp.eq.s32.totalorder %s78, 0
      %s81 = sadd.s32 %s80, 1
      %s82 = scalar_select %p79, %s80, %s81
      %p85 = pneg %p79
      %p86 = scmp.eq.s32.totalorder %s21, 1
      %p87 = por %p85, %p86
      %p88 = scmp.ne.s32.totalorder %s80, %s83
      %p89 = scmp.eq.s32.totalorder %s21, 0
      %p90 = por %p88, %p89
      %p91 = scmp.ne.s32.totalorder %s80, %s83
      %p92 = scmp.eq.s32.totalorder %s26, 1
      %p93 = por %p91, %p92
      %p94 = scmp.ne.s32.totalorder %s83, %s84
      %p95 = scmp.eq.s32.totalorder %s26, 0
      %p96 = por %p94, %p95
      %p97 = scmp.ne.s32.totalorder %s83, %s84
      %p98 = scmp.eq.s32.totalorder %s27, 1
      %p99 = por %p97, %p98
      %p101 = scmp.ne.s32.totalorder %s84, %s100
      %p102 = scmp.eq.s32.totalorder %s27, 0
      %p103 = por %p101, %p102
      %s105 = sadd.s32 %s104, 1
      %p108 = scmp.eq.s32.totalorder %s21, 1
      %p109 = scmp.ne.s32.totalorder %s104, %s106
      %p110 = scmp.eq.s32.totalorder %s21, 0
      %p111 = por %p109, %p110
      %p112 = scmp.ne.s32.totalorder %s104, %s106
      %p113 = scmp.eq.s32.totalorder %s26, 1
      %p114 = por %p112, %p113
      %p115 = scmp.ne.s32.totalorder %s106, %s107
      %p116 = scmp.eq.s32.totalorder %s26, 0
      %p117 = por %p115, %p116
      %p118 = scmp.ne.s32.totalorder %s106, %s107
      %p119 = scmp.eq.s32.totalorder %s27, 1
      %p120 = por %p118, %p119
      %p122 = scmp.ne.s32.totalorder %s107, %s121
      %p123 = scmp.eq.s32.totalorder %s27, 0
      %p124 = por %p122, %p123
      %s126 = sadd.s32 %s125, 1
      %p129 = scmp.eq.s32.totalorder %s21, 1
      %p130 = scmp.ne.s32.totalorder %s125, %s127
      %p131 = scmp.eq.s32.totalorder %s21, 0
      %p132 = por %p130, %p131
      %p133 = scmp.ne.s32.totalorder %s125, %s127
      %p134 = scmp.eq.s32.totalorder %s26, 1
      %p135 = por %p133, %p134
      %p136 = scmp.ne.s32.totalorder %s127, %s128
      %p137 = scmp.eq.s32.totalorder %s26, 0
      %p138 = por %p136, %p137
      %p139 = scmp.ne.s32.totalorder %s127, %s128
      %p140 = scmp.eq.s32.totalorder %s27, 1
      %p141 = por %p139, %p140
      %p143 = scmp.ne.s32.totalorder %s128, %s142
      %p144 = scmp.eq.s32.totalorder %s27, 0
      %p145 = por %p143, %p144
      %s147 = sadd.s32 %s146, 1
      %p150 = scmp.eq.s32.totalorder %s21, 1
      %p151 = scmp.ne.s32.totalorder %s146, %s148
      %p152 = scmp.eq.s32.totalorder %s21, 0
      %p153 = por %p151, %p152
      %p154 = scmp.ne.s32.totalorder %s146, %s148
      %p155 = scmp.eq.s32.totalorder %s26, 1
      %p156 = por %p154, %p155
      %p157 = scmp.ne.s32.totalorder %s148, %s149
      %p158 = scmp.eq.s32.totalorder %s26, 0
      %p159 = por %p157, %p158
      %p160 = scmp.ne.s32.totalorder %s148, %s149
      %p161 = scmp.eq.s32.totalorder %s27, 1
      %p162 = por %p160, %p161
      %p164 = scmp.ne.s32.totalorder %s149, %s163
      %p165 = scmp.eq.s32.totalorder %s27, 0
      %p166 = por %p164, %p165
      %s168 = sadd.s32 %s167, 1
      %p171 = scmp.eq.s32.totalorder %s21, 1
      %p172 = scmp.ne.s32.totalorder %s167, %s169
      %p173 = scmp.eq.s32.totalorder %s21, 0
      %p174 = por %p172, %p173
      %p175 = scmp.ne.s32.totalorder %s167, %s169
      %p176 = scmp.eq.s32.totalorder %s26, 1
      %p177 = por %p175, %p176
      %p178 = scmp.ne.s32.totalorder %s169, %s170
      %p179 = scmp.eq.s32.totalorder %s26, 0
      %p180 = por %p178, %p179
      %p181 = scmp.ne.s32.totalorder %s169, %s170
      %p182 = scmp.eq.s32.totalorder %s27, 1
      %p183 = por %p181, %p182
      %p185 = scmp.ne.s32.totalorder %s170, %s184
      %p186 = scmp.eq.s32.totalorder %s27, 0
      %p187 = por %p185, %p186
      %s189 = sadd.s32 %s188, 1
      %p192 = scmp.eq.s32.totalorder %s21, 1
      %p193 = scmp.ne.s32.totalorder %s188, %s190
      %p194 = scmp.eq.s32.totalorder %s21, 0
      %p195 = por %p193, %p194
      %p196 = scmp.ne.s32.totalorder %s188, %s190
      %p197 = scmp.eq.s32.totalorder %s26, 1
      %p198 = por %p196, %p197
      %p199 = scmp.ne.s32.totalorder %s190, %s191
      %p200 = scmp.eq.s32.totalorder %s26, 0
      %p201 = por %p199, %p200
      %p202 = scmp.ne.s32.totalorder %s190, %s191
      %p203 = scmp.eq.s32.totalorder %s27, 1
      %p204 = por %p202, %p203
      %p206 = scmp.ne.s32.totalorder %s191, %s205
      %p207 = scmp.eq.s32.totalorder %s27, 0
      %p208 = por %p206, %p207
      %s209 = ssub.s32 %s28, %s47
      %s210 = ssub.s32 %s29, %s43
      %s211 = sor.u32 %s209, %s210
      %p212 = scmp.eq.s32.totalorder %s211, 0
      %s214 = sadd.s32 %s213, 1
      %s215 = scalar_select %p212, %s213, %s214
      %p218 = pneg %p212
      %p219 = scmp.eq.s32.totalorder %s21, 1
      %p220 = por %p218, %p219
      %p221 = scmp.ne.s32.totalorder %s213, %s216
      %p222 = scmp.eq.s32.totalorder %s21, 0
      %p223 = por %p221, %p222
      %p224 = scmp.ne.s32.totalorder %s213, %s216
      %p225 = scmp.eq.s32.totalorder %s26, 1
      %p226 = por %p224, %p225
      %p227 = scmp.ne.s32.totalorder %s216, %s217
      %p228 = scmp.eq.s32.totalorder %s26, 0
      %p229 = por %p227, %p228
      %p230 = scmp.ne.s32.totalorder %s216, %s217
      %p231 = scmp.eq.s32.totalorder %s27, 1
      %p232 = por %p230, %p231
      %p234 = scmp.ne.s32.totalorder %s217, %s233
      %p235 = scmp.eq.s32.totalorder %s27, 0
      %p236 = por %p234, %p235
      %p237 = scmp.le.s32.totalorder 1, %s21
      %p238 = scmp.lt.s32.totalorder %s21, 3
      %p239 = pnand %p237, %p238
      %p240 = pneg %p239
      // Predicated region
      $region9: #{tpu_custom_call.1} parent=5 // pred_check
        _
      $region10: #{tpu_custom_call.1} parent=5 // pred_check_branch
        %242 = sbr.rel (%p239) target = $region12
      $region11: #{tpu_custom_call.1} parent=5 // pred_region
        %s243 = ssub.s32 %s21, 1
        // Predicated region
        $region13: #{tpu_custom_call.1} parent=11 // pred_check
          %p244 = pneg %p117
        $region14: #{tpu_custom_call.1} parent=11 // pred_check_branch
          %246 = sbr.rel (%p244) target = $region16
        $region15: #{tpu_custom_call.1} parent=11 // pred_region
          %s248 = ssub.s32 128, 128
          %249 = vsyncadd [#allocation11], %s248
          %s251 = sshll.u32 [#allocation10], 4
          %s252 = int_to_ptr.vmem [resolvable:$true] %s251
          %254 = dma.hbm_to_vmem [thread:$0]  %s2, 128, %s252, [#allocation11]
        $region16: #{tpu_custom_call.1} parent=11 // pred_fallthru
          _
        // Predicated region
        $region17: #{tpu_custom_call.1} parent=11 // pred_check
          %p255 = pneg %p138
        $region18: #{tpu_custom_call.1} parent=11 // pred_check_branch
          %257 = sbr.rel (%p255) target = $region20
        $region19: #{tpu_custom_call.1} parent=11 // pred_region
          _
        $region20: #{tpu_custom_call.1} parent=11 // pred_fallthru
          _
        // Predicated region
        $region21: #{tpu_custom_call.1} parent=11 // pred_check
          %p258 = pneg %p159
        $region22: #{tpu_custom_call.1} parent=11 // pred_check_branch
          %260 = sbr.rel (%p258) target = $region24
        $region23: #{tpu_custom_call.1} parent=11 // pred_region
          _
        $region24: #{tpu_custom_call.1} parent=11 // pred_fallthru
          _
        // Predicated region
        $region25: #{tpu_custom_call.1} parent=11 // pred_check
          %p261 = pneg %p180
        $region26: #{tpu_custom_call.1} parent=11 // pred_check_branch
          %263 = sbr.rel (%p261) target = $region28
        $region27: #{tpu_custom_call.1} parent=11 // pred_region
          _
        $region28: #{tpu_custom_call.1} parent=11 // pred_fallthru
          _
        // Predicated region
        $region29: #{tpu_custom_call.1} parent=11 // pred_check
          %p264 = pneg %p201
        $region30: #{tpu_custom_call.1} parent=11 // pred_check_branch
          %266 = sbr.rel (%p264) target = $region32
        $region31: #{tpu_custom_call.1} parent=11 // pred_region
          _
        $region32: #{tpu_custom_call.1} parent=11 // pred_fallthru
          _
      $region12: #{tpu_custom_call.1} parent=5 // pred_fallthru
        _
      %p267 = scmp.lt.s32.totalorder %s21, 2
      // Predicated region
      $region33: #{tpu_custom_call.1} parent=5 // pred_check
        %p268 = pneg %p267
      $region34: #{tpu_custom_call.1} parent=5 // pred_check_branch
        %270 = sbr.rel (%p268) target = $region36
      $region35: #{tpu_custom_call.1} parent=5 // pred_region
        // Predicated region
        $region37: #{tpu_custom_call.1} parent=35 // pred_check
          %p271 = pneg %p62
        $region38: #{tpu_custom_call.1} parent=35 // pred_check_branch
          %273 = sbr.rel (%p271) target = $region40
        $region39: #{tpu_custom_call.1} parent=35 // pred_region
          %s274 = smul.u32 2, %s29
          %p275 = scmp.lt.s32.totalorder %s28, 1
          %s276 = scalar_select %p275, %s28, 1
          %p277 = scmp.lt.s32.totalorder %s274, 1
          %s278 = scalar_select %p277, %s274, 1
          %s279 = smul.addr %s276, 4
          %s280 = sadd.s32 %s278, %s279
          %s281 = smul.addr %s280, 8
          %s282 = scalar_lea.vmem %s0, %s281
          %s283 = smul.u32 2, %s29
        $region40: #{tpu_custom_call.1} parent=35 // pred_fallthru
          _
        // Predicated region
        $region41: #{tpu_custom_call.1} parent=35 // pred_check
          %p284 = pneg %p90
        $region42: #{tpu_custom_call.1} parent=35 // pred_check_branch
          %286 = sbr.rel (%p284) target = $region44
        $region43: #{tpu_custom_call.1} parent=35 // pred_region
          %s287 = sand.u32 %s80, 1
          %s288 = scalar_lea.sflag [#allocation8], %s287
          %s289 = sand.u32 %s80, 1
          %s290 = smul.addr %s289, 32
          %s291 = scalar_lea.vmem [#allocation7], %s290
          %s292 = smul.u32 2, %s30
          %s294 = ssub.s32 512, 512
          %295 = vsyncadd %s288, %s294
          %s296 = smul.addr %s28, 4
          %s297 = sadd.s32 %s292, %s296
          %s298 = smul.addr %s297, 128
          %s299 = scalar_lea.hbm %s1, %s298
          %s300 = sshll.u32 %s291, 4
          %s301 = int_to_ptr.vmem [resolvable:$true] %s300
          %306 = dma.hbm_to_vmem [thread:$0]  %s299, 512, %s301, %s288, 256, 256, 16
        $region44: #{tpu_custom_call.1} parent=35 // pred_fallthru
          _
      $region36: #{tpu_custom_call.1} parent=5 // pred_fallthru
        _
      %p307 = scmp.le.s32.totalorder 1, %s21
      %p308 = scmp.lt.s32.totalorder %s21, 3
      %p309 = pnand %p307, %p308
      %p310 = pneg %p309
      // Predicated region
      $region45: #{tpu_custom_call.1} parent=5 // pred_check
        _
      $region46: #{tpu_custom_call.1} parent=5 // pred_check_branch
        %312 = sbr.rel (%p309) target = $region48
      $region47: #{tpu_custom_call.1} parent=5 // pred_region
        %s313 = ssub.s32 %s21, 1
        %s314 = sand.u32 %s83, 1
        %s315 = scalar_lea.sflag [#allocation8], %s314
        %s316 = sand.u32 %s83, 1
        %s317 = smul.addr %s316, 32
        %s318 = scalar_lea.vmem [#allocation7], %s317
        // Predicated region
        $region49: #{tpu_custom_call.1} parent=47 // pred_check
          %p319 = pneg %p96
        $region50: #{tpu_custom_call.1} parent=47 // pred_check_branch
          %321 = sbr.rel (%p319) target = $region52
        $region51: #{tpu_custom_call.1} parent=47 // pred_region
          %322 = dma.done %s315, 512
        $region52: #{tpu_custom_call.1} parent=47 // pred_fallthru
          _
        // Predicated region
        $region53: #{tpu_custom_call.1} parent=47 // pred_check
          %p323 = pneg %p117
        $region54: #{tpu_custom_call.1} parent=47 // pred_check_branch
          %325 = sbr.rel (%p323) target = $region56
        $region55: #{tpu_custom_call.1} parent=47 // pred_region
          %326 = dma.done [#allocation11], 128
        $region56: #{tpu_custom_call.1} parent=47 // pred_fallthru
          _
        %s327 = smul.u32 2, %s32
        %p328 = scmp.lt.s32.totalorder %s31, 1
        %s329 = scalar_select %p328, %s31, 1
        %p330 = scmp.lt.s32.totalorder %s327, 1
        %s331 = scalar_select %p330, %s327, 1
        %s332 = smul.addr %s329, 4
        %s333 = sadd.s32 %s331, %s332
        %s334 = smul.addr %s333, 8
        %s335 = scalar_lea.vmem %s0, %s334
        %p336 = pneg %p68
        %p337 = pneg %p65
        %s338 = sand.u32 %s83, 1
        %s339 = scalar_lea.sflag [#allocation8], %s338
        %s340 = sand.u32 %s83, 1
        %s341 = smul.addr %s340, 32
        %s342 = scalar_lea.vmem [#allocation7], %s341
        %p343 = pneg %p96
        %p344 = pneg %p93
        %p345 = pneg %p117
        %p346 = pneg %p114
        %p347 = pneg %p138
        %p348 = pneg %p135
        %p349 = pneg %p159
        %p350 = pneg %p156
        %p351 = pneg %p180
        %p352 = pneg %p177
        %p353 = pneg %p201
        %p354 = pneg %p198
        %p355 = pneg %p229
        %p356 = pneg %p226
        %s357 = sand.u32 %s216, 1
        %s358 = scalar_lea.sflag [#allocation9], %s357
        %s359 = sand.u32 %s216, 1
        %s360 = smul.addr %s359, 32
        %s361 = scalar_lea.vmem [#allocation12], %s360
        %s362 = smul.u32 2, %s32
        %p363 = scmp.lt.s32.totalorder %s31, 1
        %s364 = scalar_select %p363, %s31, 1
        %p365 = scmp.lt.s32.totalorder %s362, 1
        %s366 = scalar_select %p365, %s362, 1
        %s367 = smul.addr %s364, 4
        %s368 = sadd.s32 %s366, %s367
        %s369 = smul.addr %s368, 8
        %s370 = scalar_lea.vmem %s0, %s369
        %s371 = smul.u32 2, %s32
        %s372 = smul.u32 2, %s33
        %s373 = smul.u32 2, %s32
        %p375 = scmp.eq.s32.totalorder %s33, 0
        // Predicated region
        $region57: #{tpu_custom_call.1} parent=47 // pred_check
          %p376 = pneg %p375
        $region58: #{tpu_custom_call.1} parent=47 // pred_check_branch
          %378 = sbr.rel (%p376) target = $region60
        $region59: #{tpu_custom_call.1} parent=47 // pred_region
          %v379 = vld [vmem:[#allocation10] sm:$0xff]
          %v380 = vld [vmem:[%s370] sm:$0xff]
          %v381 = vld [vmem:[%s370 + $0x8] sm:$0xff]
          %v382 = vld [vmem:[%s370 + $0x10] sm:$0xff]
          %v383 = vld [vmem:[%s370 + $0x18] sm:$0xff]
          %v384 = vld [vmem:[%s3] sm:$0xff]
          %386 = vset.pattern.permute.xlu0 0
          %387 = vperm.xlu0 %386, %v384
          %v388 = vpop.permute.xlu0 %387
          %vm390 = vcmask 130048
          %v392 = vsel %vm390, %v379, 0
          %394 = vmatprep.subr.mxu0 0.0
          %395 = vmatpush1.msra.mxu0 0.0
          %396 = vmatprep.subr.mxu0 0.0
          %397 = vmatpush1.msra.mxu0 0.0
          %398 = vmatprep.subr.mxu0 0.0
          %399 = vmatpush1.msra.mxu0 0.0
          %400 = vmatprep.subr.mxu0 0.0
          %401 = vmatpush1.msra.mxu0 0.0
          %402 = vmatprep.subr.mxu0 0.0
          %403 = vmatpush1.msra.mxu0 0.0
          %404 = vmatprep.subr.mxu0 0.0
          %405 = vmatpush1.msra.mxu0 0.0
          %406 = vmatprep.subr.mxu0 0.0
          %407 = vmatpush1.msra.mxu0 0.0
          %408 = vmatprep.subr.mxu0 0.0
          %409 = vmatpush1.msra.mxu0 0.0
          %410 = vmatprep.subr.mxu0 0.0
          %411 = vmatpush1.msra.mxu0 0.0
          %412 = vmatprep.subr.mxu0 0.0
          %413 = vmatpush1.msra.mxu0 0.0
          %414 = vmatprep.subr.mxu0 0.0
          %415 = vmatpush1.msra.mxu0 0.0
          %416 = vmatprep.subr.mxu0 0.0
          %417 = vmatpush1.msra.mxu0 0.0
          %418 = vmatprep.subr.mxu0 0.0
          %419 = vmatpush1.msra.mxu0 0.0
          %420 = vmatprep.subr.mxu0 0.0
          %421 = vmatpush1.msra.mxu0 0.0
          %422 = vmatprep.subr.mxu0 %v383
          %423 = vmatpush1.msra.mxu0 %v382
          %424 = vmatprep.subr.mxu0 %v381
          %425 = vmatpush1.msra.mxu0 %v380
          %426 = vmatprep.subr.mxu0 0.0
          %427 = vmatpush2.msra.mxu0 0.0
          %428 = vmatprep.subr.mxu0 0.0
          %429 = vmatpush2.msra.mxu0 0.0
          %430 = vmatprep.subr.mxu0 0.0
          %431 = vmatpush2.msra.mxu0 0.0
          %432 = vmatprep.subr.mxu0 0.0
          %433 = vmatpush2.msra.mxu0 0.0
          %434 = vmatprep.subr.mxu0 0.0
          %435 = vmatpush2.msra.mxu0 0.0
          %436 = vmatprep.subr.mxu0 0.0
          %437 = vmatpush2.msra.mxu0 0.0
          %438 = vmatprep.subr.mxu0 0.0
          %439 = vmatpush2.msra.mxu0 0.0
          %440 = vmatprep.subr.mxu0 0.0
          %441 = vmatpush2.msra.mxu0 0.0
          %442 = vmatprep.subr.mxu0 0.0
          %443 = vmatpush2.msra.mxu0 0.0
          %444 = vmatprep.subr.mxu0 0.0
          %445 = vmatpush2.msra.mxu0 0.0
          %446 = vmatprep.subr.mxu0 0.0
          %447 = vmatpush2.msra.mxu0 0.0
          %448 = vmatprep.subr.mxu0 0.0
          %449 = vmatpush2.msra.mxu0 0.0
          %450 = vmatprep.subr.mxu0 0.0
          %451 = vmatpush2.msra.mxu0 0.0
          %452 = vmatprep.subr.mxu0 0.0
          %453 = vmatpush2.msra.mxu0 0.0
          %454 = vmatprep.subr.mxu0 0.0
          %455 = vmatpush2.msra.mxu0 0.0
          %456 = vmatprep.subr.mxu0 0.0
          %457 = vmatpush2.msra.mxu0 0.0
          %458 = vmatprep.mubr.f32.mxu0 0.0
          %459 = vmatmul.mubr.f32.gmra.mxu0 %v392
          %v460 = vpop.f32.mrf.mxu0
          %v461 = vadd.f32 %v388, %v460
          %v462 = vpop.f32.mrf.mxu0
          %v463 = vadd.f32 %v388, %v462
          %464 = vdwg.mxu0
          %465 = vst [vmem:[#allocation2] sm:$0xff] %v461
          %466 = vst [vmem:[#allocation2 + $0x8] sm:$0xff] %v463
          %v467 = vlaneseq
          %vm468 = vcmp.ge.s32.totalorder %v467, 0
          %vm469 = vcmp.lt.s32.totalorder %v467, 256
          %vm470 = vmand %vm468, %vm469
          %471 = vst.msk [vmem:[#allocation3] sm:$0x3] %vm470, -inf
          %472 = vst.msk [vmem:[#allocation4] sm:$0x3] %vm470, 0.0
          %473 = vst [vmem:[#allocation5] sm:$0xff] 0.0
          %474 = vst [vmem:[#allocation5 + $0x8] sm:$0xff] 0.0
          %475 = vst [vmem:[#allocation5 + $0x10] sm:$0xff] 0.0
          %476 = vst [vmem:[#allocation5 + $0x18] sm:$0xff] 0.0
        $region60: #{tpu_custom_call.1} parent=47 // pred_fallthru
          _
        %v477 = vld [vmem:[%s4] sm:$0xff]
        %v478 = vld [vmem:[%s4 + $0x8] sm:$0xff]
        %v479 = vld [vmem:[%s4 + $0x10] sm:$0xff]
        %v480 = vld [vmem:[%s318] sm:$0xff]
        %v481 = vld [vmem:[%s318 + $0x8] sm:$0xff]
        %v482 = vld [vmem:[%s318 + $0x10] sm:$0xff]
        %v483 = vld [vmem:[%s318 + $0x18] sm:$0xff]
        %v484 = vld [vmem:[%s5] sm:$0xff]
        %v485 = vld [vmem:[%s5 + $0x8] sm:$0xff]
        %v486 = vld [vmem:[%s5 + $0x10] sm:$0xff]
        %488 = vset.pattern.permute.xlu0 0
        %489 = vperm.xlu0 %488, %v484
        %v490 = vpop.permute.xlu0 %489
        %493 = vset.pattern.permute.xlu0 0
        %494 = vperm.xlu0 %493, %v485
        %v495 = vpop.permute.xlu0 %494
        %498 = vset.pattern.permute.xlu0 0
        %499 = vperm.xlu0 %498, %v486
        %v500 = vpop.permute.xlu0 %499
        %vm502 = vcmask 130048
        %v504 = vsel %vm502, %v477, 0
        %v507 = vsel %vm502, %v478, 0
        %v510 = vsel %vm502, %v479, 0
        %512 = vmatprep.subr.mxu0 0.0
        %513 = vmatpush1.msra.mxu0 0.0
        %514 = vmatprep.subr.mxu0 0.0
        %515 = vmatpush1.msra.mxu0 0.0
        %516 = vmatprep.subr.mxu0 0.0
        %517 = vmatpush1.msra.mxu0 0.0
        %518 = vmatprep.subr.mxu0 0.0
        %519 = vmatpush1.msra.mxu0 0.0
        %520 = vmatprep.subr.mxu0 0.0
        %521 = vmatpush1.msra.mxu0 0.0
        %522 = vmatprep.subr.mxu0 0.0
        %523 = vmatpush1.msra.mxu0 0.0
        %524 = vmatprep.subr.mxu0 0.0
        %525 = vmatpush1.msra.mxu0 0.0
        %526 = vmatprep.subr.mxu0 0.0
        %527 = vmatpush1.msra.mxu0 0.0
        %528 = vmatprep.subr.mxu0 0.0
        %529 = vmatpush1.msra.mxu0 0.0
        %530 = vmatprep.subr.mxu0 0.0
        %531 = vmatpush1.msra.mxu0 0.0
        %532 = vmatprep.subr.mxu0 0.0
        %533 = vmatpush1.msra.mxu0 0.0
        %534 = vmatprep.subr.mxu0 0.0
        %535 = vmatpush1.msra.mxu0 0.0
        %536 = vmatprep.subr.mxu0 0.0
        %537 = vmatpush1.msra.mxu0 0.0
        %538 = vmatprep.subr.mxu0 0.0
        %539 = vmatpush1.msra.mxu0 0.0
        %540 = vmatprep.subr.mxu0 %v483
        %541 = vmatpush1.msra.mxu0 %v482
        %542 = vmatprep.subr.mxu0 %v481
        %543 = vmatpush1.msra.mxu0 %v480
        %544 = vmatprep.subr.mxu0 0.0
        %545 = vmatpush2.msra.mxu0 0.0
        %546 = vmatprep.subr.mxu0 0.0
        %547 = vmatpush2.msra.mxu0 0.0
        %548 = vmatprep.subr.mxu0 0.0
        %549 = vmatpush2.msra.mxu0 0.0
        %550 = vmatprep.subr.mxu0 0.0
        %551 = vmatpush2.msra.mxu0 0.0
        %552 = vmatprep.subr.mxu0 0.0
        %553 = vmatpush2.msra.mxu0 0.0
        %554 = vmatprep.subr.mxu0 0.0
        %555 = vmatpush2.msra.mxu0 0.0
        %556 = vmatprep.subr.mxu0 0.0
        %557 = vmatpush2.msra.mxu0 0.0
        %558 = vmatprep.subr.mxu0 0.0
        %559 = vmatpush2.msra.mxu0 0.0
        %560 = vmatprep.subr.mxu0 0.0
        %561 = vmatpush2.msra.mxu0 0.0
        %562 = vmatprep.subr.mxu0 0.0
        %563 = vmatpush2.msra.mxu0 0.0
        %564 = vmatprep.subr.mxu0 0.0
        %565 = vmatpush2.msra.mxu0 0.0
        %566 = vmatprep.subr.mxu0 0.0
        %567 = vmatpush2.msra.mxu0 0.0
        %568 = vmatprep.subr.mxu0 0.0
        %569 = vmatpush2.msra.mxu0 0.0
        %570 = vmatprep.subr.mxu0 0.0
        %571 = vmatpush2.msra.mxu0 0.0
        %572 = vmatprep.subr.mxu0 0.0
        %573 = vmatpush2.msra.mxu0 0.0
        %574 = vmatprep.subr.mxu0 0.0
        %575 = vmatpush2.msra.mxu0 0.0
        %576 = vmatprep.mubr.f32.mxu0 0.0
        %577 = vmatmul.mubr.f32.gmra.mxu0 %v504
        %v578 = vpop.f32.mrf.mxu0
        %v579 = vadd.f32 %v490, %v578
        %v580 = vpop.f32.mrf.mxu0
        %v581 = vadd.f32 %v490, %v580
        %582 = vmatprep.mubr.f32.mxu0 0.0
        %583 = vmatmul.mubr.f32.gmra.mxu0 %v507
        %v584 = vpop.f32.mrf.mxu0
        %v585 = vadd.f32 %v495, %v584
        %v586 = vpop.f32.mrf.mxu0
        %v587 = vadd.f32 %v495, %v586
        %588 = vmatprep.mubr.f32.mxu0 0.0
        %589 = vmatmul.mubr.f32.gmra.mxu0 %v510
        %v590 = vpop.f32.mrf.mxu0
        %v591 = vadd.f32 %v500, %v590
        %v592 = vpop.f32.mrf.mxu0
        %v593 = vadd.f32 %v500, %v592
        %594 = vdwg.mxu0
        %v595 = vpack.c.bf16 %v579, %v579
        %v596 = vpack.c.bf16 %v581, %v581
        %v597 = vld [vmem:[#allocation2] sm:$0xff]
        %v598 = vld [vmem:[#allocation2 + $0x8] sm:$0xff]
        %v599 = vpack.c.bf16 %v597, %v597
        %v600 = vpack.c.bf16 %v598, %v598
        %601 = vxpose.xlu0.c.b16.start [1/8] %v595, 128
        %602 = vxpose.xlu0.c.b16.cont [2/8] 0, 128
        %603 = vxpose.xlu0.c.b16.cont [3/8] 0, 128
        %604 = vxpose.xlu0.c.b16.cont [4/8] 0, 128
        %605 = vxpose.xlu0.c.b16.cont [5/8] 0, 128
        %606 = vxpose.xlu0.c.b16.cont [6/8] 0, 128
        %607 = vxpose.xlu0.c.b16.cont [7/8] 0, 128
        %608 = vxpose.xlu0.c.b16.end [8/8] 0, 128
        %v609 = vpop.trf.xlu0
        %v610 = vpop.trf.xlu0
        %v611 = vpop.trf.xlu0
        %v612 = vpop.trf.xlu0
        %v613 = vpop.trf.xlu0
        %v614 = vpop.trf.xlu0
        %v615 = vpop.trf.xlu0
        %v616 = vpop.trf.xlu0
        %617 = vxpose.xlu0.c.b16.start [1/8] %v596, 128
        %618 = vxpose.xlu0.c.b16.cont [2/8] 0, 128
        %619 = vxpose.xlu0.c.b16.cont [3/8] 0, 128
        %620 = vxpose.xlu0.c.b16.cont [4/8] 0, 128
        %621 = vxpose.xlu0.c.b16.cont [5/8] 0, 128
        %622 = vxpose.xlu0.c.b16.cont [6/8] 0, 128
        %623 = vxpose.xlu0.c.b16.cont [7/8] 0, 128
        %624 = vxpose.xlu0.c.b16.end [8/8] 0, 128
        %v625 = vpop.trf.xlu0
        %v626 = vpop.trf.xlu0
        %v627 = vpop.trf.xlu0
        %v628 = vpop.trf.xlu0
        %v629 = vpop.trf.xlu0
        %v630 = vpop.trf.xlu0
        %v631 = vpop.trf.xlu0
        %v632 = vpop.trf.xlu0
        %vm633 = vcmask 64512
        %v635 = vsel %vm633, %v609, 0
        %v638 = vsel %vm633, %v610, 0
        %v641 = vsel %vm633, %v611, 0
        %v644 = vsel %vm633, %v612, 0
        %v647 = vsel %vm633, %v613, 0
        %v650 = vsel %vm633, %v614, 0
        %v653 = vsel %vm633, %v615, 0
        %v656 = vsel %vm633, %v616, 0
        %v659 = vsel %vm633, %v625, 0
        %v662 = vsel %vm633, %v626, 0
        %v665 = vsel %vm633, %v627, 0
        %v668 = vsel %vm633, %v628, 0
        %v671 = vsel %vm633, %v629, 0
        %v674 = vsel %vm633, %v630, 0
        %v677 = vsel %vm633, %v631, 0
        %v680 = vsel %vm633, %v632, 0
        %vm682 = vcmask 1043456
        %v684 = vsel %vm682, %v599, 0
        %v687 = vsel %vm682, %v600, 0
        %689 = vmatprep.subr.bf16.mxu0 0
        %690 = vmatpush1.bf16.msra.mxu0 0
        %691 = vmatprep.subr.bf16.mxu0 0
        %692 = vmatpush1.bf16.msra.mxu0 0
        %693 = vmatprep.subr.bf16.mxu0 0
        %694 = vmatpush1.bf16.msra.mxu0 0
        %695 = vmatprep.subr.bf16.mxu0 0
        %696 = vmatpush1.bf16.msra.mxu0 0
        %697 = vmatprep.subr.bf16.mxu0 0
        %698 = vmatpush1.bf16.msra.mxu0 0
        %699 = vmatprep.subr.bf16.mxu0 0
        %700 = vmatpush1.bf16.msra.mxu0 0
        %701 = vmatprep.subr.bf16.mxu0 0
        %702 = vmatpush1.bf16.msra.mxu0 0
        %703 = vmatprep.subr.bf16.mxu0 %v687
        %704 = vmatpush1.bf16.msra.mxu0 %v684
        %705 = vmatprep.subr.bf16.mxu0 0
        %706 = vmatpush2.bf16.msra.mxu0 0
        %707 = vmatprep.subr.bf16.mxu0 0
        %708 = vmatpush2.bf16.msra.mxu0 0
        %709 = vmatprep.subr.bf16.mxu0 0
        %710 = vmatpush2.bf16.msra.mxu0 0
        %711 = vmatprep.subr.bf16.mxu0 0
        %712 = vmatpush2.bf16.msra.mxu0 0
        %713 = vmatprep.subr.bf16.mxu0 0
        %714 = vmatpush2.bf16.msra.mxu0 0
        %715 = vmatprep.subr.bf16.mxu0 0
        %716 = vmatpush2.bf16.msra.mxu0 0
        %717 = vmatprep.subr.bf16.mxu0 0
        %718 = vmatpush2.bf16.msra.mxu0 0
        %719 = vmatprep.subr.bf16.mxu0 0
        %720 = vmatpush2.bf16.msra.mxu0 0
        %721 = vmatprep.mubr.bf16.mxu0 0
        %722 = vmatmul.mubr.bf16.gmra.mxu0 %v635
        %v723 = vpop.f32.mrf.mxu0
        %v724 = vadd.f32 0.0, %v723
        %v725 = vpop.f32.mrf.mxu0
        %v726 = vadd.f32 0.0, %v725
        %v727 = vpop.f32.mrf.mxu0
        %v728 = vadd.f32 0.0, %v727
        %v729 = vpop.f32.mrf.mxu0
        %v730 = vadd.f32 0.0, %v729
        %731 = vmatprep.mubr.bf16.mxu0 0
        %732 = vmatmul.mubr.bf16.gmra.mxu0 %v638
        %v733 = vpop.f32.mrf.mxu0
        %v734 = vadd.f32 0.0, %v733
        %v735 = vpop.f32.mrf.mxu0
        %v736 = vadd.f32 0.0, %v735
        %v737 = vpop.f32.mrf.mxu0
        %v738 = vadd.f32 0.0, %v737
        %v739 = vpop.f32.mrf.mxu0
        %v740 = vadd.f32 0.0, %v739
        %741 = vmatprep.mubr.bf16.mxu0 0
        %742 = vmatmul.mubr.bf16.gmra.mxu0 %v641
        %v743 = vpop.f32.mrf.mxu0
        %v744 = vadd.f32 0.0, %v743
        %v745 = vpop.f32.mrf.mxu0
        %v746 = vadd.f32 0.0, %v745
        %v747 = vpop.f32.mrf.mxu0
        %v748 = vadd.f32 0.0, %v747
        %v749 = vpop.f32.mrf.mxu0
        %v750 = vadd.f32 0.0, %v749
        %751 = vmatprep.mubr.bf16.mxu0 0
        %752 = vmatmul.mubr.bf16.gmra.mxu0 %v644
        %v753 = vpop.f32.mrf.mxu0
        %v754 = vadd.f32 0.0, %v753
        %v755 = vpop.f32.mrf.mxu0
        %v756 = vadd.f32 0.0, %v755
        %v757 = vpop.f32.mrf.mxu0
        %v758 = vadd.f32 0.0, %v757
        %v759 = vpop.f32.mrf.mxu0
        %v760 = vadd.f32 0.0, %v759
        %761 = vmatprep.mubr.bf16.mxu0 0
        %762 = vmatmul.mubr.bf16.gmra.mxu0 %v647
        %v763 = vpop.f32.mrf.mxu0
        %v764 = vadd.f32 0.0, %v763
        %v765 = vpop.f32.mrf.mxu0
        %v766 = vadd.f32 0.0, %v765
        %v767 = vpop.f32.mrf.mxu0
        %v768 = vadd.f32 0.0, %v767
        %v769 = vpop.f32.mrf.mxu0
        %v770 = vadd.f32 0.0, %v769
        %771 = vmatprep.mubr.bf16.mxu0 0
        %772 = vmatmul.mubr.bf16.gmra.mxu0 %v650
        %v773 = vpop.f32.mrf.mxu0
        %v774 = vadd.f32 0.0, %v773
        %v775 = vpop.f32.mrf.mxu0
        %v776 = vadd.f32 0.0, %v775
        %v777 = vpop.f32.mrf.mxu0
        %v778 = vadd.f32 0.0, %v777
        %v779 = vpop.f32.mrf.mxu0
        %v780 = vadd.f32 0.0, %v779
        %781 = vmatprep.mubr.bf16.mxu0 0
        %782 = vmatmul.mubr.bf16.gmra.mxu0 %v653
        %v783 = vpop.f32.mrf.mxu0
        %v784 = vadd.f32 0.0, %v783
        %v785 = vpop.f32.mrf.mxu0
        %v786 = vadd.f32 0.0, %v785
        %v787 = vpop.f32.mrf.mxu0
        %v788 = vadd.f32 0.0, %v787
        %v789 = vpop.f32.mrf.mxu0
        %v790 = vadd.f32 0.0, %v789
        %791 = vmatprep.mubr.bf16.mxu0 0
        %792 = vmatmul.mubr.bf16.gmra.mxu0 %v656
        %v793 = vpop.f32.mrf.mxu0
        %v794 = vadd.f32 0.0, %v793
        %v795 = vpop.f32.mrf.mxu0
        %v796 = vadd.f32 0.0, %v795
        %v797 = vpop.f32.mrf.mxu0
        %v798 = vadd.f32 0.0, %v797
        %v799 = vpop.f32.mrf.mxu0
        %v800 = vadd.f32 0.0, %v799
        %801 = vmatprep.mubr.bf16.mxu0 0
        %802 = vmatmul.mubr.bf16.gmra.mxu0 %v659
        %v803 = vpop.f32.mrf.mxu0
        %v804 = vadd.f32 0.0, %v803
        %v805 = vpop.f32.mrf.mxu0
        %v806 = vadd.f32 0.0, %v805
        %v807 = vpop.f32.mrf.mxu0
        %v808 = vadd.f32 0.0, %v807
        %v809 = vpop.f32.mrf.mxu0
        %v810 = vadd.f32 0.0, %v809
        %811 = vmatprep.mubr.bf16.mxu0 0
        %812 = vmatmul.mubr.bf16.gmra.mxu0 %v662
        %v813 = vpop.f32.mrf.mxu0
        %v814 = vadd.f32 0.0, %v813
        %v815 = vpop.f32.mrf.mxu0
        %v816 = vadd.f32 0.0, %v815
        %v817 = vpop.f32.mrf.mxu0
        %v818 = vadd.f32 0.0, %v817
        %v819 = vpop.f32.mrf.mxu0
        %v820 = vadd.f32 0.0, %v819
        %821 = vmatprep.mubr.bf16.mxu0 0
        %822 = vmatmul.mubr.bf16.gmra.mxu0 %v665
        %v823 = vpop.f32.mrf.mxu0
        %v824 = vadd.f32 0.0, %v823
        %v825 = vpop.f32.mrf.mxu0
        %v826 = vadd.f32 0.0, %v825
        %v827 = vpop.f32.mrf.mxu0
        %v828 = vadd.f32 0.0, %v827
        %v829 = vpop.f32.mrf.mxu0
        %v830 = vadd.f32 0.0, %v829
        %831 = vmatprep.mubr.bf16.mxu0 0
        %832 = vmatmul.mubr.bf16.gmra.mxu0 %v668
        %v833 = vpop.f32.mrf.mxu0
        %v834 = vadd.f32 0.0, %v833
        %v835 = vpop.f32.mrf.mxu0
        %v836 = vadd.f32 0.0, %v835
        %v837 = vpop.f32.mrf.mxu0
        %v838 = vadd.f32 0.0, %v837
        %v839 = vpop.f32.mrf.mxu0
        %v840 = vadd.f32 0.0, %v839
        %841 = vmatprep.mubr.bf16.mxu0 0
        %842 = vmatmul.mubr.bf16.gmra.mxu0 %v671
        %v843 = vpop.f32.mrf.mxu0
        %v844 = vadd.f32 0.0, %v843
        %v845 = vpop.f32.mrf.mxu0
        %v846 = vadd.f32 0.0, %v845
        %v847 = vpop.f32.mrf.mxu0
        %v848 = vadd.f32 0.0, %v847
        %v849 = vpop.f32.mrf.mxu0
        %v850 = vadd.f32 0.0, %v849
        %851 = vmatprep.mubr.bf16.mxu0 0
        %852 = vmatmul.mubr.bf16.gmra.mxu0 %v674
        %v853 = vpop.f32.mrf.mxu0
        %v854 = vadd.f32 0.0, %v853
        %v855 = vpop.f32.mrf.mxu0
        %v856 = vadd.f32 0.0, %v855
        %v857 = vpop.f32.mrf.mxu0
        %v858 = vadd.f32 0.0, %v857
        %v859 = vpop.f32.mrf.mxu0
        %v860 = vadd.f32 0.0, %v859
        %861 = vmatprep.mubr.bf16.mxu0 0
        %862 = vmatmul.mubr.bf16.gmra.mxu0 %v677
        %v863 = vpop.f32.mrf.mxu0
        %v864 = vadd.f32 0.0, %v863
        %v865 = vpop.f32.mrf.mxu0
        %v866 = vadd.f32 0.0, %v865
        %v867 = vpop.f32.mrf.mxu0
        %v868 = vadd.f32 0.0, %v867
        %v869 = vpop.f32.mrf.mxu0
        %v870 = vadd.f32 0.0, %v869
        %871 = vmatprep.mubr.bf16.mxu0 0
        %872 = vmatmul.mubr.bf16.gmra.mxu0 %v680
        %v873 = vpop.f32.mrf.mxu0
        %v874 = vadd.f32 0.0, %v873
        %v875 = vpop.f32.mrf.mxu0
        %v876 = vadd.f32 0.0, %v875
        %v877 = vpop.f32.mrf.mxu0
        %v878 = vadd.f32 0.0, %v877
        %v879 = vpop.f32.mrf.mxu0
        %v880 = vadd.f32 0.0, %v879
        %881 = vdwg.mxu0
        %v882 = vld [vmem:[#allocation3] sm:$0x3]
        %v883 = vmax.f32 %v724, %v734
        %v884 = vmax.f32 %v728, %v738
        %v885 = vmax.f32 %v883, %v744
        %v886 = vmax.f32 %v884, %v748
        %v887 = vmax.f32 %v885, %v754
        %v888 = vmax.f32 %v886, %v758
        %v889 = vmax.f32 %v887, %v764
        %v890 = vmax.f32 %v888, %v768
        %v891 = vmax.f32 %v889, %v774
        %v892 = vmax.f32 %v890, %v778
        %v893 = vmax.f32 %v891, %v784
        %v894 = vmax.f32 %v892, %v788
        %v895 = vmax.f32 %v893, %v794
        %v896 = vmax.f32 %v894, %v798
        %v897 = vmax.f32 %v895, %v804
        %v898 = vmax.f32 %v896, %v808
        %v899 = vmax.f32 %v897, %v814
        %v900 = vmax.f32 %v898, %v818
        %v901 = vmax.f32 %v899, %v824
        %v902 = vmax.f32 %v900, %v828
        %v903 = vmax.f32 %v901, %v834
        %v904 = vmax.f32 %v902, %v838
        %v905 = vmax.f32 %v903, %v844
        %v906 = vmax.f32 %v904, %v848
        %v907 = vmax.f32 %v905, %v854
        %v908 = vmax.f32 %v906, %v858
        %v909 = vmax.f32 %v907, %v864
        %v910 = vmax.f32 %v908, %v868
        %v911 = vmax.f32 %v909, %v874
        %v912 = vmax.f32 %v910, %v878
        %v913 = vmax.f32 %v911, %v912
        %v914 = vrot.slane %v913, 4
        %v915 = vmax.f32 %v913, %v914
        %v916 = vrot.slane %v915, 2
        %v917 = vmax.f32 %v915, %v916
        %v918 = vrot.slane %v917, 1
        %v919 = vmax.f32 %v917, %v918
        %v920 = vmax.f32 %v726, %v736
        %v921 = vmax.f32 %v730, %v740
        %v922 = vmax.f32 %v920, %v746
        %v923 = vmax.f32 %v921, %v750
        %v924 = vmax.f32 %v922, %v756
        %v925 = vmax.f32 %v923, %v760
        %v926 = vmax.f32 %v924, %v766
        %v927 = vmax.f32 %v925, %v770
        %v928 = vmax.f32 %v926, %v776
        %v929 = vmax.f32 %v927, %v780
        %v930 = vmax.f32 %v928, %v786
        %v931 = vmax.f32 %v929, %v790
        %v932 = vmax.f32 %v930, %v796
        %v933 = vmax.f32 %v931, %v800
        %v934 = vmax.f32 %v932, %v806
        %v935 = vmax.f32 %v933, %v810
        %v936 = vmax.f32 %v934, %v816
        %v937 = vmax.f32 %v935, %v820
        %v938 = vmax.f32 %v936, %v826
        %v939 = vmax.f32 %v937, %v830
        %v940 = vmax.f32 %v938, %v836
        %v941 = vmax.f32 %v939, %v840
        %v942 = vmax.f32 %v940, %v846
        %v943 = vmax.f32 %v941, %v850
        %v944 = vmax.f32 %v942, %v856
        %v945 = vmax.f32 %v943, %v860
        %v946 = vmax.f32 %v944, %v866
        %v947 = vmax.f32 %v945, %v870
        %v948 = vmax.f32 %v946, %v876
        %v949 = vmax.f32 %v947, %v880
        %v950 = vmax.f32 %v948, %v949
        %v951 = vrot.slane %v950, 4
        %v952 = vmax.f32 %v950, %v951
        %v953 = vrot.slane %v952, 2
        %v954 = vmax.f32 %v952, %v953
        %v955 = vrot.slane %v954, 1
        %v956 = vmax.f32 %v954, %v955
        %v959 = vcombine.low %v919, %v956
        %v961 = vunpack.c.l.s4 1966171168
        %v962 = vunpack.c.0.s8 %v961
        %v963 = vlaneseq
        %v964 = vshrl.u32 %v963, 7
        %v965 = vsub.s32 %v962, %v964
        %v966 = vrot.slane %v959, %v965
        %v968 = vunpack.c.l.s4 1966171168
        %v969 = vunpack.c.0.s8 %v968
        %v970 = vlaneseq
        %v971 = vshrl.u32 %v970, 7
        %v972 = vsub.s32 %v969, %v971
        %v973 = vrot.slane %v966, %v972
        %v975 = vmax.f32 %v882, %v973
        %v976 = vsub.f32 %v882, %v975
        %v977 = vmul.f32 %v976, 1.442695
        %v978 = vpow.pop %v977
        %v980 = vlaneseq
        %v981 = vshrl.u32 %v980, 7
        %v982 = vsub.s32 0, %v981
        %v983 = vrot.slane %v975, %v982
        %v984 = vlaneseq
        %v985 = vshrl.u32 %v984, 7
        %v986 = vsub.s32 1, %v985
        %v987 = vrot.slane %v975, %v986
        %v990 = vsub.f32 %v724, %v983
        %v991 = vsub.f32 %v726, %v987
        %v992 = vsub.f32 %v728, %v983
        %v993 = vsub.f32 %v730, %v987
        %v994 = vsub.f32 %v734, %v983
        %v995 = vsub.f32 %v736, %v987
        %v996 = vsub.f32 %v738, %v983
        %v997 = vsub.f32 %v740, %v987
        %v998 = vsub.f32 %v744, %v983
        %v999 = vsub.f32 %v746, %v987
        %v1000 = vsub.f32 %v748, %v983
        %v1001 = vsub.f32 %v750, %v987
        %v1002 = vsub.f32 %v754, %v983
        %v1003 = vsub.f32 %v756, %v987
        %v1004 = vsub.f32 %v758, %v983
        %v1005 = vsub.f32 %v760, %v987
        %v1006 = vsub.f32 %v764, %v983
        %v1007 = vsub.f32 %v766, %v987
        %v1008 = vsub.f32 %v768, %v983
        %v1009 = vsub.f32 %v770, %v987
        %v1010 = vsub.f32 %v774, %v983
        %v1011 = vsub.f32 %v776, %v987
        %v1012 = vsub.f32 %v778, %v983
        %v1013 = vsub.f32 %v780, %v987
        %v1014 = vsub.f32 %v784, %v983
        %v1015 = vsub.f32 %v786, %v987
        %v1016 = vsub.f32 %v788, %v983
        %v1017 = vsub.f32 %v790, %v987
        %v1018 = vsub.f32 %v794, %v983
        %v1019 = vsub.f32 %v796, %v987
        %v1020 = vsub.f32 %v798, %v983
        %v1021 = vsub.f32 %v800, %v987
        %v1022 = vsub.f32 %v804, %v983
        %v1023 = vsub.f32 %v806, %v987
        %v1024 = vsub.f32 %v808, %v983
        %v1025 = vsub.f32 %v810, %v987
        %v1026 = vsub.f32 %v814, %v983
        %v1027 = vsub.f32 %v816, %v987
        %v1028 = vsub.f32 %v818, %v983
        %v1029 = vsub.f32 %v820, %v987
        %v1030 = vsub.f32 %v824, %v983
        %v1031 = vsub.f32 %v826, %v987
        %v1032 = vsub.f32 %v828, %v983
        %v1033 = vsub.f32 %v830, %v987
        %v1034 = vsub.f32 %v834, %v983
        %v1035 = vsub.f32 %v836, %v987
        %v1036 = vsub.f32 %v838, %v983
        %v1037 = vsub.f32 %v840, %v987
        %v1038 = vsub.f32 %v844, %v983
        %v1039 = vsub.f32 %v846, %v987
        %v1040 = vsub.f32 %v848, %v983
        %v1041 = vsub.f32 %v850, %v987
        %v1042 = vsub.f32 %v854, %v983
        %v1043 = vsub.f32 %v856, %v987
        %v1044 = vsub.f32 %v858, %v983
        %v1045 = vsub.f32 %v860, %v987
        %v1046 = vsub.f32 %v864, %v983
        %v1047 = vsub.f32 %v866, %v987
        %v1048 = vsub.f32 %v868, %v983
        %v1049 = vsub.f32 %v870, %v987
        %v1050 = vsub.f32 %v874, %v983
        %v1051 = vsub.f32 %v876, %v987
        %v1052 = vsub.f32 %v878, %v983
        %v1053 = vsub.f32 %v880, %v987
        %v1054 = vmul.f32 %v990, 1.442695
        %v1055 = vpow.pop %v1054
        %v1056 = vmul.f32 %v991, 1.442695
        %v1057 = vpow.pop %v1056
        %v1058 = vmul.f32 %v992, 1.442695
        %v1059 = vpow.pop %v1058
        %v1060 = vmul.f32 %v993, 1.442695
        %v1061 = vpow.pop %v1060
        %v1062 = vmul.f32 %v994, 1.442695
        %v1063 = vpow.pop %v1062
        %v1064 = vmul.f32 %v995, 1.442695
        %v1065 = vpow.pop %v1064
        %v1066 = vmul.f32 %v996, 1.442695
        %v1067 = vpow.pop %v1066
        %v1068 = vmul.f32 %v997, 1.442695
        %v1069 = vpow.pop %v1068
        %v1070 = vmul.f32 %v998, 1.442695
        %v1071 = vpow.pop %v1070
        %v1072 = vmul.f32 %v999, 1.442695
        %v1073 = vpow.pop %v1072
        %v1074 = vmul.f32 %v1000, 1.442695
        %v1075 = vpow.pop %v1074
        %v1076 = vmul.f32 %v1001, 1.442695
        %v1077 = vpow.pop %v1076
        %v1078 = vmul.f32 %v1002, 1.442695
        %v1079 = vpow.pop %v1078
        %v1080 = vmul.f32 %v1003, 1.442695
        %v1081 = vpow.pop %v1080
        %v1082 = vmul.f32 %v1004, 1.442695
        %v1083 = vpow.pop %v1082
        %v1084 = vmul.f32 %v1005, 1.442695
        %v1085 = vpow.pop %v1084
        %v1086 = vmul.f32 %v1006, 1.442695
        %v1087 = vpow.pop %v1086
        %v1088 = vmul.f32 %v1007, 1.442695
        %v1089 = vpow.pop %v1088
        %v1090 = vmul.f32 %v1008, 1.442695
        %v1091 = vpow.pop %v1090
        %v1092 = vmul.f32 %v1009, 1.442695
        %v1093 = vpow.pop %v1092
        %v1094 = vmul.f32 %v1010, 1.442695
        %v1095 = vpow.pop %v1094
        %v1096 = vmul.f32 %v1011, 1.442695
        %v1097 = vpow.pop %v1096
        %v1098 = vmul.f32 %v1012, 1.442695
        %v1099 = vpow.pop %v1098
        %v1100 = vmul.f32 %v1013, 1.442695
        %v1101 = vpow.pop %v1100
        %v1102 = vmul.f32 %v1014, 1.442695
        %v1103 = vpow.pop %v1102
        %v1104 = vmul.f32 %v1015, 1.442695
        %v1105 = vpow.pop %v1104
        %v1106 = vmul.f32 %v1016, 1.442695
        %v1107 = vpow.pop %v1106
        %v1108 = vmul.f32 %v1017, 1.442695
        %v1109 = vpow.pop %v1108
        %v1110 = vmul.f32 %v1018, 1.442695
        %v1111 = vpow.pop %v1110
        %v1112 = vmul.f32 %v1019, 1.442695
        %v1113 = vpow.pop %v1112
        %v1114 = vmul.f32 %v1020, 1.442695
        %v1115 = vpow.pop %v1114
        %v1116 = vmul.f32 %v1021, 1.442695
        %v1117 = vpow.pop %v1116
        %v1118 = vmul.f32 %v1022, 1.442695
        %v1119 = vpow.pop %v1118
        %v1120 = vmul.f32 %v1023, 1.442695
        %v1121 = vpow.pop %v1120
        %v1122 = vmul.f32 %v1024, 1.442695
        %v1123 = vpow.pop %v1122
        %v1124 = vmul.f32 %v1025, 1.442695
        %v1125 = vpow.pop %v1124
        %v1126 = vmul.f32 %v1026, 1.442695
        %v1127 = vpow.pop %v1126
        %v1128 = vmul.f32 %v1027, 1.442695
        %v1129 = vpow.pop %v1128
        %v1130 = vmul.f32 %v1028, 1.442695
        %v1131 = vpow.pop %v1130
        %v1132 = vmul.f32 %v1029, 1.442695
        %v1133 = vpow.pop %v1132
        %v1134 = vmul.f32 %v1030, 1.442695
        %v1135 = vpow.pop %v1134
        %v1136 = vmul.f32 %v1031, 1.442695
        %v1137 = vpow.pop %v1136
        %v1138 = vmul.f32 %v1032, 1.442695
        %v1139 = vpow.pop %v1138
        %v1140 = vmul.f32 %v1033, 1.442695
        %v1141 = vpow.pop %v1140
        %v1142 = vmul.f32 %v1034, 1.442695
        %v1143 = vpow.pop %v1142
        %v1144 = vmul.f32 %v1035, 1.442695
        %v1145 = vpow.pop %v1144
        %v1146 = vmul.f32 %v1036, 1.442695
        %v1147 = vpow.pop %v1146
        %v1148 = vmul.f32 %v1037, 1.442695
        %v1149 = vpow.pop %v1148
        %v1150 = vmul.f32 %v1038, 1.442695
        %v1151 = vpow.pop %v1150
        %v1152 = vmul.f32 %v1039, 1.442695
        %v1153 = vpow.pop %v1152
        %v1154 = vmul.f32 %v1040, 1.442695
        %v1155 = vpow.pop %v1154
        %v1156 = vmul.f32 %v1041, 1.442695
        %v1157 = vpow.pop %v1156
        %v1158 = vmul.f32 %v1042, 1.442695
        %v1159 = vpow.pop %v1158
        %v1160 = vmul.f32 %v1043, 1.442695
        %v1161 = vpow.pop %v1160
        %v1162 = vmul.f32 %v1044, 1.442695
        %v1163 = vpow.pop %v1162
        %v1164 = vmul.f32 %v1045, 1.442695
        %v1165 = vpow.pop %v1164
        %v1166 = vmul.f32 %v1046, 1.442695
        %v1167 = vpow.pop %v1166
        %v1168 = vmul.f32 %v1047, 1.442695
        %v1169 = vpow.pop %v1168
        %v1170 = vmul.f32 %v1048, 1.442695
        %v1171 = vpow.pop %v1170
        %v1172 = vmul.f32 %v1049, 1.442695
        %v1173 = vpow.pop %v1172
        %v1174 = vmul.f32 %v1050, 1.442695
        %v1175 = vpow.pop %v1174
        %v1176 = vmul.f32 %v1051, 1.442695
        %v1177 = vpow.pop %v1176
        %v1178 = vmul.f32 %v1052, 1.442695
        %v1179 = vpow.pop %v1178
        %v1180 = vmul.f32 %v1053, 1.442695
        %v1181 = vpow.pop %v1180
        %v1182 = vld [vmem:[#allocation4] sm:$0x3]
        %v1183 = vmul.f32 %v978, %v1182
        %v1184 = vadd.f32 %v1055, %v1059
        %v1185 = vadd.f32 %v1184, %v1063
        %v1186 = vadd.f32 %v1185, %v1067
        %v1187 = vadd.f32 %v1186, %v1071
        %v1188 = vadd.f32 %v1187, %v1075
        %v1189 = vadd.f32 %v1188, %v1079
        %v1190 = vadd.f32 %v1189, %v1083
        %v1191 = vadd.f32 %v1190, %v1087
        %v1192 = vadd.f32 %v1191, %v1091
        %v1193 = vadd.f32 %v1192, %v1095
        %v1194 = vadd.f32 %v1193, %v1099
        %v1195 = vadd.f32 %v1194, %v1103
        %v1196 = vadd.f32 %v1195, %v1107
        %v1197 = vadd.f32 %v1196, %v1111
        %v1198 = vadd.f32 %v1197, %v1115
        %v1199 = vadd.f32 %v1198, %v1119
        %v1200 = vadd.f32 %v1199, %v1123
        %v1201 = vadd.f32 %v1200, %v1127
        %v1202 = vadd.f32 %v1201, %v1131
        %v1203 = vadd.f32 %v1202, %v1135
        %v1204 = vadd.f32 %v1203, %v1139
        %v1205 = vadd.f32 %v1204, %v1143
        %v1206 = vadd.f32 %v1205, %v1147
        %v1207 = vadd.f32 %v1206, %v1151
        %v1208 = vadd.f32 %v1207, %v1155
        %v1209 = vadd.f32 %v1208, %v1159
        %v1210 = vadd.f32 %v1209, %v1163
        %v1211 = vadd.f32 %v1210, %v1167
        %v1212 = vadd.f32 %v1211, %v1171
        %v1213 = vadd.f32 %v1212, %v1175
        %v1214 = vadd.f32 %v1213, %v1179
        %v1215 = vrot.slane %v1214, 4
        %v1216 = vadd.f32 %v1214, %v1215
        %v1217 = vrot.slane %v1216, 2
        %v1218 = vadd.f32 %v1216, %v1217
        %v1219 = vrot.slane %v1218, 1
        %v1220 = vadd.f32 %v1218, %v1219
        %v1221 = vadd.f32 %v1057, %v1061
        %v1222 = vadd.f32 %v1221, %v1065
        %v1223 = vadd.f32 %v1222, %v1069
        %v1224 = vadd.f32 %v1223, %v1073
        %v1225 = vadd.f32 %v1224, %v1077
        %v1226 = vadd.f32 %v1225, %v1081
        %v1227 = vadd.f32 %v1226, %v1085
        %v1228 = vadd.f32 %v1227, %v1089
        %v1229 = vadd.f32 %v1228, %v1093
        %v1230 = vadd.f32 %v1229, %v1097
        %v1231 = vadd.f32 %v1230, %v1101
        %v1232 = vadd.f32 %v1231, %v1105
        %v1233 = vadd.f32 %v1232, %v1109
        %v1234 = vadd.f32 %v1233, %v1113
        %v1235 = vadd.f32 %v1234, %v1117
        %v1236 = vadd.f32 %v1235, %v1121
        %v1237 = vadd.f32 %v1236, %v1125
        %v1238 = vadd.f32 %v1237, %v1129
        %v1239 = vadd.f32 %v1238, %v1133
        %v1240 = vadd.f32 %v1239, %v1137
        %v1241 = vadd.f32 %v1240, %v1141
        %v1242 = vadd.f32 %v1241, %v1145
        %v1243 = vadd.f32 %v1242, %v1149
        %v1244 = vadd.f32 %v1243, %v1153
        %v1245 = vadd.f32 %v1244, %v1157
        %v1246 = vadd.f32 %v1245, %v1161
        %v1247 = vadd.f32 %v1246, %v1165
        %v1248 = vadd.f32 %v1247, %v1169
        %v1249 = vadd.f32 %v1248, %v1173
        %v1250 = vadd.f32 %v1249, %v1177
        %v1251 = vadd.f32 %v1250, %v1181
        %v1252 = vrot.slane %v1251, 4
        %v1253 = vadd.f32 %v1251, %v1252
        %v1254 = vrot.slane %v1253, 2
        %v1255 = vadd.f32 %v1253, %v1254
        %v1256 = vrot.slane %v1255, 1
        %v1257 = vadd.f32 %v1255, %v1256
        %v1260 = vcombine.low %v1220, %v1257
        %v1262 = vunpack.c.l.s4 1966171168
        %v1263 = vunpack.c.0.s8 %v1262
        %v1264 = vlaneseq
        %v1265 = vshrl.u32 %v1264, 7
        %v1266 = vsub.s32 %v1263, %v1265
        %v1267 = vrot.slane %v1260, %v1266
        %v1269 = vunpack.c.l.s4 1966171168
        %v1270 = vunpack.c.0.s8 %v1269
        %v1271 = vlaneseq
        %v1272 = vshrl.u32 %v1271, 7
        %v1273 = vsub.s32 %v1270, %v1272
        %v1274 = vrot.slane %v1267, %v1273
        %v1276 = vadd.f32 %v1183, %v1274
        %v1277 = vlaneseq
        %vm1278 = vcmp.ge.s32.totalorder %v1277, 0
        %vm1279 = vcmp.lt.s32.totalorder %v1277, 256
        %vm1280 = vmand %vm1278, %vm1279
        %1281 = vst.msk [vmem:[#allocation4] sm:$0x3] %vm1280, %v1276
        %v1282 = vld [vmem:[#allocation5] sm:$0xff]
        %v1283 = vld [vmem:[#allocation5 + $0x8] sm:$0xff]
        %v1284 = vld [vmem:[#allocation5 + $0x10] sm:$0xff]
        %v1285 = vld [vmem:[#allocation5 + $0x18] sm:$0xff]
        %v1287 = vlaneseq
        %v1288 = vshrl.u32 %v1287, 7
        %v1289 = vsub.s32 0, %v1288
        %v1290 = vrot.slane %v978, %v1289
        %v1291 = vlaneseq
        %v1292 = vshrl.u32 %v1291, 7
        %v1293 = vsub.s32 1, %v1292
        %v1294 = vrot.slane %v978, %v1293
        %v1297 = vmul.f32 %v1290, %v1282
        %v1298 = vmul.f32 %v1294, %v1283
        %v1299 = vmul.f32 %v1290, %v1284
        %v1300 = vmul.f32 %v1294, %v1285
        %v1301 = vpack.c.bf16 %v591, %v585
        %v1302 = vpack.c.bf16 %v593, %v587
        %v1303 = vpack.c.bf16 %v1059, %v1055
        %v1304 = vpack.c.bf16 %v1061, %v1057
        %v1305 = vpack.c.bf16 %v1067, %v1063
        %v1306 = vpack.c.bf16 %v1069, %v1065
        %v1307 = vpack.c.bf16 %v1075, %v1071
        %v1308 = vpack.c.bf16 %v1077, %v1073
        %v1309 = vpack.c.bf16 %v1083, %v1079
        %v1310 = vpack.c.bf16 %v1085, %v1081
        %v1311 = vpack.c.bf16 %v1091, %v1087
        %v1312 = vpack.c.bf16 %v1093, %v1089
        %v1313 = vpack.c.bf16 %v1099, %v1095
        %v1314 = vpack.c.bf16 %v1101, %v1097
        %v1315 = vpack.c.bf16 %v1107, %v1103
        %v1316 = vpack.c.bf16 %v1109, %v1105
        %v1317 = vpack.c.bf16 %v1115, %v1111
        %v1318 = vpack.c.bf16 %v1117, %v1113
        %v1319 = vpack.c.bf16 %v1123, %v1119
        %v1320 = vpack.c.bf16 %v1125, %v1121
        %v1321 = vpack.c.bf16 %v1131, %v1127
        %v1322 = vpack.c.bf16 %v1133, %v1129
        %v1323 = vpack.c.bf16 %v1139, %v1135
        %v1324 = vpack.c.bf16 %v1141, %v1137
        %v1325 = vpack.c.bf16 %v1147, %v1143
        %v1326 = vpack.c.bf16 %v1149, %v1145
        %v1327 = vpack.c.bf16 %v1155, %v1151
        %v1328 = vpack.c.bf16 %v1157, %v1153
        %v1329 = vpack.c.bf16 %v1163, %v1159
        %v1330 = vpack.c.bf16 %v1165, %v1161
        %v1331 = vpack.c.bf16 %v1171, %v1167
        %v1332 = vpack.c.bf16 %v1173, %v1169
        %v1333 = vpack.c.bf16 %v1179, %v1175
        %v1334 = vpack.c.bf16 %v1181, %v1177
        %1335 = vmatprep.subr.bf16.mxu0 %v1318
        %1336 = vmatpush1.bf16.msra.mxu0 %v1317
        %1337 = vmatprep.subr.bf16.mxu0 %v1316
        %1338 = vmatpush1.bf16.msra.mxu0 %v1315
        %1339 = vmatprep.subr.bf16.mxu0 %v1314
        %1340 = vmatpush1.bf16.msra.mxu0 %v1313
        %1341 = vmatprep.subr.bf16.mxu0 %v1312
        %1342 = vmatpush1.bf16.msra.mxu0 %v1311
        %1343 = vmatprep.subr.bf16.mxu0 %v1310
        %1344 = vmatpush1.bf16.msra.mxu0 %v1309
        %1345 = vmatprep.subr.bf16.mxu0 %v1308
        %1346 = vmatpush1.bf16.msra.mxu0 %v1307
        %1347 = vmatprep.subr.bf16.mxu0 %v1306
        %1348 = vmatpush1.bf16.msra.mxu0 %v1305
        %1349 = vmatprep.subr.bf16.mxu0 %v1304
        %1350 = vmatpush1.bf16.msra.mxu0 %v1303
        %1351 = vmatprep.subr.bf16.mxu0 %v1334
        %1352 = vmatpush2.bf16.msra.mxu0 %v1333
        %1353 = vmatprep.subr.bf16.mxu0 %v1332
        %1354 = vmatpush2.bf16.msra.mxu0 %v1331
        %1355 = vmatprep.subr.bf16.mxu0 %v1330
        %1356 = vmatpush2.bf16.msra.mxu0 %v1329
        %1357 = vmatprep.subr.bf16.mxu0 %v1328
        %1358 = vmatpush2.bf16.msra.mxu0 %v1327
        %1359 = vmatprep.subr.bf16.mxu0 %v1326
        %1360 = vmatpush2.bf16.msra.mxu0 %v1325
        %1361 = vmatprep.subr.bf16.mxu0 %v1324
        %1362 = vmatpush2.bf16.msra.mxu0 %v1323
        %1363 = vmatprep.subr.bf16.mxu0 %v1322
        %1364 = vmatpush2.bf16.msra.mxu0 %v1321
        %1365 = vmatprep.subr.bf16.mxu0 %v1320
        %1366 = vmatpush2.bf16.msra.mxu0 %v1319
        %1367 = vmatprep.mubr.bf16.mxu0 %v1302
        %1368 = vmatmul.mubr.bf16.gmra.mxu0 %v1301
        %v1369 = vpop.f32.mrf.mxu0
        %v1370 = vadd.f32 0.0, %v1369
        %v1371 = vpop.f32.mrf.mxu0
        %v1372 = vadd.f32 0.0, %v1371
        %v1373 = vpop.f32.mrf.mxu0
        %v1374 = vadd.f32 0.0, %v1373
        %v1375 = vpop.f32.mrf.mxu0
        %v1376 = vadd.f32 0.0, %v1375
        %1377 = vdwg.mxu0
        %v1378 = vadd.f32 %v1297, %v1370
        %v1379 = vadd.f32 %v1298, %v1372
        %v1380 = vadd.f32 %v1299, %v1374
        %v1381 = vadd.f32 %v1300, %v1376
        %1382 = vst [vmem:[#allocation5] sm:$0xff] %v1378
        %1383 = vst [vmem:[#allocation5 + $0x8] sm:$0xff] %v1379
        %1384 = vst [vmem:[#allocation5 + $0x10] sm:$0xff] %v1380
        %1385 = vst [vmem:[#allocation5 + $0x18] sm:$0xff] %v1381
        %1386 = vst.msk [vmem:[#allocation3] sm:$0x3] %vm1280, %v975
        // Predicated region
        $region61: #{tpu_custom_call.1} parent=47 // pred_check
          %p1387 = pneg %p375
        $region62: #{tpu_custom_call.1} parent=47 // pred_check_branch
          %1389 = sbr.rel (%p1387) target = $region64
        $region63: #{tpu_custom_call.1} parent=47 // pred_region
          %v1390 = vld [vmem:[#allocation4] sm:$0x3]
          %v1391 = vrcp.pop %v1390
          %s1392 = sld [smem:[#allocation6]]
          %v1393 = vld [vmem:[#allocation5] sm:$0xff]
          %v1394 = vld [vmem:[#allocation5 + $0x8] sm:$0xff]
          %v1395 = vld [vmem:[#allocation5 + $0x10] sm:$0xff]
          %v1396 = vld [vmem:[#allocation5 + $0x18] sm:$0xff]
          %v1398 = vlaneseq
          %v1399 = vshrl.u32 %v1398, 7
          %v1400 = vsub.s32 0, %v1399
          %v1401 = vrot.slane %v1391, %v1400
          %v1402 = vlaneseq
          %v1403 = vshrl.u32 %v1402, 7
          %v1404 = vsub.s32 1, %v1403
          %v1405 = vrot.slane %v1391, %v1404
          %v1408 = vmul.f32 %v1393, %v1401
          %v1409 = vmul.f32 %v1394, %v1405
          %v1410 = vmul.f32 %v1395, %v1401
          %v1411 = vmul.f32 %v1396, %v1405
          %v1412 = vstv %s1392
          %v1413 = vmul.f32 %v1412, %v1408
          %v1414 = vmul.f32 %v1412, %v1409
          %v1415 = vmul.f32 %v1412, %v1410
          %v1416 = vmul.f32 %v1412, %v1411
          %v1417 = vld [vmem:[%s370] sm:$0xff]
          %v1418 = vld [vmem:[%s370 + $0x8] sm:$0xff]
          %v1419 = vld [vmem:[%s370 + $0x10] sm:$0xff]
          %v1420 = vld [vmem:[%s370 + $0x18] sm:$0xff]
          %v1421 = vadd.f32 %v1413, %v1417
          %v1422 = vadd.f32 %v1414, %v1418
          %v1423 = vadd.f32 %v1415, %v1419
          %v1424 = vadd.f32 %v1416, %v1420
          %1425 = vst [vmem:[%s361] sm:$0xff] %v1421
          %1426 = vst [vmem:[%s361 + $0x8] sm:$0xff] %v1422
          %1427 = vst [vmem:[%s361 + $0x10] sm:$0xff] %v1423
          %1428 = vst [vmem:[%s361 + $0x18] sm:$0xff] %v1424
        $region64: #{tpu_custom_call.1} parent=47 // pred_fallthru
          _
        %s1429 = sand.u32 %s216, 1
        %s1430 = scalar_lea.sflag [#allocation9], %s1429
        %s1431 = sand.u32 %s216, 1
        %s1432 = smul.addr %s1431, 32
        %s1433 = scalar_lea.vmem [#allocation12], %s1432
        // Predicated region
        $region65: #{tpu_custom_call.1} parent=47 // pred_check
          %p1434 = pneg %p226
        $region66: #{tpu_custom_call.1} parent=47 // pred_check_branch
          %1436 = sbr.rel (%p1434) target = $region68
        $region67: #{tpu_custom_call.1} parent=47 // pred_region
          %s1437 = smul.u32 2, %s32
          %s1439 = ssub.s32 512, 512
          %1440 = vsyncadd %s1430, %s1439
          %s1441 = smul.addr %s31, 4
          %s1442 = sadd.s32 %s1437, %s1441
          %s1443 = smul.addr %s1442, 128
          %s1444 = scalar_lea.hbm %s7, %s1443
          %s1445 = sshll.u32 %s1433, 4
          %s1446 = int_to_ptr.vmem [resolvable:$true] %s1445
          %1451 = dma.vmem_to_hbm [thread:$0]  %s1446, 512, %s1444, %s1430, 256, 256, 16
        $region68: #{tpu_custom_call.1} parent=47 // pred_fallthru
          _
      $region48: #{tpu_custom_call.1} parent=5 // pred_fallthru
        _
      %p1452 = scmp.le.s32.totalorder 2, %s21
      // Predicated region
      $region69: #{tpu_custom_call.1} parent=5 // pred_check
        %p1453 = pneg %p1452
      $region70: #{tpu_custom_call.1} parent=5 // pred_check_branch
        %1455 = sbr.rel (%p1453) target = $region72
      $region71: #{tpu_custom_call.1} parent=5 // pred_region
        %s1456 = ssub.s32 %s21, 2
        // Predicated region
        $region73: #{tpu_custom_call.1} parent=71 // pred_check
          %p1457 = pneg %p232
        $region74: #{tpu_custom_call.1} parent=71 // pred_check_branch
          %1459 = sbr.rel (%p1457) target = $region76
        $region75: #{tpu_custom_call.1} parent=71 // pred_region
          %s1460 = sand.u32 %s217, 1
          %s1461 = scalar_lea.sflag [#allocation9], %s1460
          %s1462 = sand.u32 %s217, 1
          %s1463 = smul.addr %s1462, 32
          %s1464 = scalar_lea.vmem [#allocation12], %s1463
          %1465 = dma.done %s1461, 512
        $region76: #{tpu_custom_call.1} parent=71 // pred_fallthru
          _
      $region72: #{tpu_custom_call.1} parent=5 // pred_fallthru
        _
    $region6: #{tpu_custom_call.1} parent=1 // loop_footer
      %s25 = sadd.s32 1, %s21
    $region7: #{tpu_custom_call.1} parent=1 // loop_footer_branch
      %20 = sbr.rel target = $region3
    $region8: #{tpu_custom_call.1} parent=1 // loop_exit
      _
    %1466 = vsyncpa [#allocation8], 1
    %s1467 = scalar_lea.sflag [#allocation8], 1
    %1468 = vsyncpa %s1467, 1
    %1469 = vsyncpa [#allocation11], 1
    %1470 = vsyncpa [#allocation9], 1
    %s1471 = scalar_lea.sflag [#allocation9], 1
    %1472 = vsyncpa %s1471, 1

</llo_original>
